<compile_context>
chip_gen: v7x
topology: tpu7x:2x2x1
jax: 0.10.0
libtpu: 0.0.40
codegen_flags: <defaults>
</compile_context>

<pallas_src>
import jax
import jax.numpy as jnp
from jax.experimental import pallas as pl
from jax.experimental.pallas import tpu as pltpu

# ----------------------------- configuration -------------------------------
EMB_DIM = 32                     # emb_dim
SEQ_LEN = 16                     # sequence length (>= largest conv kernel 10)
BATCH = 2
FEATURE_KERNEL = {1: 64, 2: 64, 3: 64, 5: 64, 10: 64}   # ordering is load-bearing
MLP_DIMS = [64]                  # mlp_dims (single hidden layer)
DOMAIN_NUM = 3
VOCAB = 100
VOCAB_PAD = 128                  # lane-dense one-hot width (rows 100..127 zero)
BN_EPS = 1e-5
CONV_C = 64                      # channels per conv branch
CONV_C_PAD = 128                 # lane-aligned per-tap channel block
NUM_BRANCHES = len(FEATURE_KERNEL)
NUM_TAPS = sum(FEATURE_KERNEL.keys())        # 21
MLP_IN = NUM_BRANCHES * CONV_C               # 320 (logical)
MLP_IN_PAD = NUM_BRANCHES * CONV_C_PAD       # 640 (lane-padded feature width)
HIDDEN = MLP_DIMS[0]                         # 64
HEAD_OUT_PAD = 128                           # lane-dense fused-head output width
CONV_TAP_COLS = NUM_TAPS * CONV_C_PAD        # 21 * 128 = 2688

# per-branch (kernel size, first lane column of its stacked, padded taps)
BRANCH_TAP_OFFSETS = []
_off = 0
for _k in FEATURE_KERNEL:
    BRANCH_TAP_OFFSETS.append((_k, _off))
    _off += _k * CONV_C_PAD
assert _off == CONV_TAP_COLS
del _k, _off

_VMEM = pl.BlockSpec(memory_space=pltpu.MemorySpace.VMEM)


# ------------------------------ fused kernel --------------------------------
def _eann_fused_kernel(tok_ref, cwf_ref, w1_ref, w2_ref, b_ref, out_ref):
    # tok_ref: (B*S, 1) int32  (mask folded in: masked tokens -> zero table row)
    # cwf_ref: (128, 2688) bf16  -- tok_emb folded into all conv taps, lane-padded
    # w1_ref:  (640, 128)  bf16  -- BN-folded first layers of both heads, row-padded
    # w2_ref:  (128, 128)  bf16  -- block-diagonal fused second layers
    # b_ref:   (2, 128)    f32   -- row 0: b1 (+ conv-bias fold), row 1: b2
    # out_ref: (B, 128)    f32   -- col 0: sigmoid(classifier logit), cols 1..3: domain logits
    B = out_ref.shape[0]
    M = tok_ref.shape[0]
    S = M // B
    VP = cwf_ref.shape[0]

    # --- one-hot lookup fused with all 21 conv taps: one bf16 MXU matmul ---
    lane = jax.lax.broadcasted_iota(jnp.int32, (M, VP), 1)
    onehot = (lane == tok_ref[...]).astype(jnp.bfloat16)                   # (B*S, 128)
    y = jnp.dot(onehot, cwf_ref[...], preferred_element_type=jnp.float32)  # (B*S, 2688)
    y = y.reshape(B, S, CONV_TAP_COLS)

    # --- per-branch temporal sum via XLU rolls, then masked max-pool over time ---
    pooled = []
    for ksize, off in BRANCH_TAP_OFFSETS:
        lout = S - ksize + 1
        acc = y[:, :, off:off + CONV_C_PAD]                                # tap 0
        for j in range(1, ksize):                                          # static unroll
            tap = y[:, :, off + j * CONV_C_PAD:off + (j + 1) * CONV_C_PAD]
            acc = acc + pltpu.roll(tap, shift=S - j, axis=1)               # acc[t] += tap[t+j]
        t_idx = jax.lax.broadcasted_iota(jnp.int32, acc.shape, 1)
        acc = jnp.where(t_idx < lout, acc, -jnp.inf)                       # drop wrapped windows
        # torch.max_pool1d(f, f.shape[-1]) == max over time (conv bias is folded into b1)
        pooled.append(jnp.max(acc, axis=1))                                # (B, 128)
    feature = jnp.concatenate(pooled, axis=1)                              # (B, 640)

    # --- fused classifier + domain heads (eval BN + conv bias folded into w1/b1) ---
    # classifier: Linear->BN->ReLU->Dropout(id)->Linear(->1)->sigmoid
    # domain:     ReverseLayerF(id)->Linear->BN->ReLU->Dropout(id)->ReLU(idempotent)
    #             ->Linear(->domain_num)
    bias = b_ref[...]                                                      # (2, 128)
    h = jnp.dot(feature.astype(jnp.bfloat16), w1_ref[...],
                preferred_element_type=jnp.float32) + bias[0:1, :]         # (B, 128)
    h = jnp.maximum(h, 0.0)
    logits = jnp.dot(h.astype(jnp.bfloat16), w2_ref[...],
                     preferred_element_type=jnp.float32) + bias[1:2, :]    # (B, 128)
    col = jax.lax.broadcasted_iota(jnp.int32, logits.shape, 1)
    out_ref[...] = jnp.where(col == 0, jax.nn.sigmoid(logits), logits)


def _fused_forward(packed, tok2):
    B = tok2.shape[0] // SEQ_LEN
    return pl.pallas_call(
        _eann_fused_kernel,
        out_shape=jax.ShapeDtypeStruct((B, HEAD_OUT_PAD), jnp.float32),
        in_specs=[_VMEM] * 5,
        out_specs=_VMEM,
    )(tok2, packed['conv_w_fused'], packed['w1_all'], packed['w2_all'],
      packed['b_all'])


# ------------------------------- parameters ---------------------------------
def init_params(key):
    keys = jax.random.split(key, 16)
    ki = iter(keys)
    p = {}
    p['tok_emb'] = jax.random.normal(next(ki), (VOCAB, EMB_DIM), jnp.float32) * 0.02
    for k, c in FEATURE_KERNEL.items():
        p[f'conv_w_{k}'] = jax.random.normal(next(ki), (k, EMB_DIM, c), jnp.float32) * 0.05
        p[f'conv_b_{k}'] = jnp.full((1, c), 0.01, jnp.float32)
    h = HIDDEN
    # classifier MLP (output_layer=True -> final Linear(h, 1))
    p['wc1'] = jax.random.normal(next(ki), (MLP_IN, h), jnp.float32) * 0.05
    p['bc1'] = jnp.zeros((1, h), jnp.float32)
    p['gc1'] = jnp.ones((1, h), jnp.float32)     # BatchNorm1d gamma
    p['bec1'] = jnp.zeros((1, h), jnp.float32)   # BatchNorm1d beta
    p['rmc1'] = jnp.zeros((1, h), jnp.float32)   # running mean
    p['rvc1'] = jnp.ones((1, h), jnp.float32)    # running var
    p['wc2'] = jax.random.normal(next(ki), (h, 1), jnp.float32) * 0.05
    p['bc2'] = jnp.zeros((1, 1), jnp.float32)
    # domain classifier: MLP(output_layer=False) -> ReLU -> Linear(h, domain_num)
    p['wd1'] = jax.random.normal(next(ki), (MLP_IN, h), jnp.float32) * 0.05
    p['bd1'] = jnp.zeros((1, h), jnp.float32)
    p['gd1'] = jnp.ones((1, h), jnp.float32)
    p['bed1'] = jnp.zeros((1, h), jnp.float32)
    p['rmd1'] = jnp.zeros((1, h), jnp.float32)
    p['rvd1'] = jnp.ones((1, h), jnp.float32)
    p['wd2'] = jax.random.normal(next(ki), (h, DOMAIN_NUM), jnp.float32) * 0.05
    p['bd2'] = jnp.zeros((1, DOMAIN_NUM), jnp.float32)
    return p


def pack_params(p):
    """Host-side one-time algebra: fold tok_emb/BN/conv-bias, 128-lane-pad taps."""
    # (1) embedding folded into every conv tap; channels padded 64->128,
    #     vocab rows padded 100->128 (padded rows zero -> masked/null tokens).
    taps = []
    for k in FEATURE_KERNEL:                       # NOTE: same order as BRANCH_TAP_OFFSETS
        w = p[f'conv_w_{k}']                       # (k, E, 64)
        for j in range(k):
            tap = p['tok_emb'] @ w[j]              # (V, 64)
            taps.append(jnp.pad(tap, ((0, VOCAB_PAD - VOCAB),
                                      (0, CONV_C_PAD - CONV_C))))
    conv_w_fused = jnp.concatenate(taps, axis=1).astype(jnp.bfloat16)   # (128, 2688)

    # (2) eval-mode BatchNorm1d folded into the preceding Linear of each head
    def fold_bn(w, b, gamma, beta, mean, var):
        scale = gamma * jax.lax.rsqrt(var + BN_EPS)        # (1, H)
        return w * scale, (b - mean) * scale + beta

    wc1, bc1 = fold_bn(p['wc1'], p['bc1'], p['gc1'], p['bec1'], p['rmc1'], p['rvc1'])
    wd1, bd1 = fold_bn(p['wd1'], p['bd1'], p['gd1'], p['bed1'], p['rmd1'], p['rvd1'])
    w1 = jnp.concatenate([wc1, wd1], axis=1)               # (320, 128)
    b1 = jnp.concatenate([bc1, bd1], axis=1)                # (1, 128)

    # row-pad w1 to (640, 128) so each branch's 64 channels start on a 128-lane
    # boundary of the padded feature; padded rows are zero.
    w1_pad = jnp.zeros((MLP_IN_PAD, 2 * HIDDEN), jnp.float32)
    cb_pad = jnp.zeros((1, MLP_IN_PAD), jnp.float32)
    for bidx, k in enumerate(FEATURE_KERNEL):
        r0 = bidx * CONV_C_PAD
        w1_pad = w1_pad.at[r0:r0 + CONV_C, :].set(
            w1[bidx * CONV_C:(bidx + 1) * CONV_C, :])
        cb_pad = cb_pad.at[:, r0:r0 + CONV_C].set(p[f'conv_b_{k}'])

    # (3) conv bias folded through w1: (feat + cb) @ w1 + b1 == feat @ w1 + (cb@w1 + b1)
    b1_fold = b1 + cb_pad @ w1_pad                          # (1, 128)

    # (4) block-diagonal fused second layer: rows 0..63 -> classifier col 0,
    #     rows 64..127 -> domain cols 1..3, rest zero (lane padding to 128)
    w2 = jnp.zeros((2 * HIDDEN, HEAD_OUT_PAD), jnp.float32)
    w2 = w2.at[:HIDDEN, 0:1].set(p['wc2'])
    w2 = w2.at[HIDDEN:, 1:1 + DOMAIN_NUM].set(p['wd2'])
    b2 = jnp.zeros((1, HEAD_OUT_PAD), jnp.float32)
    b2 = b2.at[0, 0].set(p['bc2'][0, 0])
    b2 = b2.at[0, 1:1 + DOMAIN_NUM].set(p['bd2'][0])

    return dict(conv_w_fused=conv_w_fused,
                w1_all=w1_pad.astype(jnp.bfloat16),
                w2_all=w2.astype(jnp.bfloat16),
                b_all=jnp.concatenate([b1_fold, b2], axis=0))   # (2, 128) f32


# -------------------------------- forward -----------------------------------
def eann_forward(packed, alpha, content, content_masks):
    del alpha  # ReverseLayerF only flips gradients; identity in forward
    # Fold the attention mask into the token ids: masked positions index the
    # all-zero table row (index VOCAB) -> zero embedding, identical to the
    # mask-multiplied lookup.  Ship ids as a lane-broadcast (B*S, 1) column.
    ids = jnp.where(content_masks.astype(jnp.int32) != 0,
                    content.astype(jnp.int32), VOCAB)
    tok2 = ids.reshape(-1, 1)                                # (B*S, 1) int32
    out = _fused_forward(packed, tok2)                       # (B, 128)
    pred = out[:, 0]                                         # sigmoid(output.squeeze(1))
    domain_pred = out[:, 1:1 + DOMAIN_NUM]                   # raw domain logits
    return pred, domain_pred


if __name__ == "__main__":
    key = jax.random.PRNGKey(0)
    pkey, ckey = jax.random.split(key)
    params = init_params(pkey)
    packed = pack_params(params)

    content = jax.random.randint(ckey, (BATCH, SEQ_LEN), 0, VOCAB, jnp.int32)
    content_masks = jnp.ones((BATCH, SEQ_LEN), jnp.int32)
    alpha = 1.0

    pred, domain_pred = eann_forward(packed, alpha, content, content_masks)
    jax.block_until_ready((pred, domain_pred))

    assert pred.shape == (BATCH,)
    assert domain_pred.shape == (BATCH, DOMAIN_NUM)
    assert bool(jnp.all((pred >= 0.0) & (pred <= 1.0)))
    assert bool(jnp.all(jnp.isfinite(domain_pred)))
    print("KERNEL_OK")
</pallas_src>

<mosaic_0001>
module attributes {stable_mosaic.version = 11 : i64} {
  func.func @_eann_fused_kernel(%arg0: memref<32x1xi32, #tpu.memory_space<vmem>>, %arg1: memref<128x2688xbf16, #tpu.memory_space<vmem>>, %arg2: memref<640x128xbf16, #tpu.memory_space<vmem>>, %arg3: memref<128x128xbf16, #tpu.memory_space<vmem>>, %arg4: memref<2x128xf32, #tpu.memory_space<vmem>>, %arg5: memref<2x128xf32, #tpu.memory_space<vmem>>) attributes {dimension_semantics = [], scalar_prefetch = 0 : i64, scratch_operands = 0 : i64, tpu.core_type = #tpu.core_type<tc>} {
    %0 = tpu.iota {dimensions = array<i32: 1>} : vector<32x128xi32>
    %c0 = arith.constant 0 : index
    %c0_0 = arith.constant 0 : index
    %1 = vector.load %arg0[%c0, %c0_0] : memref<32x1xi32, #tpu.memory_space<vmem>>, vector<32x1xi32>
    %2 = vector.broadcast %1 : vector<32x1xi32> to vector<32x128xi32>
    %3 = arith.cmpi eq, %0, %2 : vector<32x128xi32>
    %4 = arith.extui %3 : vector<32x128xi1> to vector<32x128xi32>
    %5 = arith.sitofp %4 : vector<32x128xi32> to vector<32x128xf32>
    %6 = arith.truncf %5 : vector<32x128xf32> to vector<32x128xbf16>
    %c0_1 = arith.constant 0 : index
    %c0_2 = arith.constant 0 : index
    %7 = vector.load %arg1[%c0_1, %c0_2] : memref<128x2688xbf16, #tpu.memory_space<vmem>>, vector<128x2688xbf16>
    %cst = arith.constant dense<0.000000e+00> : vector<32x2688xf32>
    %8 = tpu.matmul %6, %7, %cst {dimension_numbers = #tpu.dot_dimension_numbers<[1], [0], [0], [1], [0, 0, 1, 1], [], []>} : vector<32x128xbf16>, vector<128x2688xbf16>, vector<32x2688xf32> -> vector<32x2688xf32>
    %9 = vector.shape_cast %8 : vector<32x2688xf32> to vector<2x16x2688xf32>
    %10 = vector.extract_strided_slice %9 {offsets = [0, 0, 0], sizes = [2, 16, 128], strides = [1, 1, 1]} : vector<2x16x2688xf32> to vector<2x16x128xf32>
    %11 = tpu.iota {dimensions = array<i32: 1>} : vector<2x16x128xi32>
    %c16_i32 = arith.constant 16 : i32
    %12 = vector.broadcast %c16_i32 : i32 to vector<2x16x128xi32>
    %13 = arith.cmpi slt, %11, %12 : vector<2x16x128xi32>
    %cst_3 = arith.constant 0xFF800000 : f32
    %14 = vector.broadcast %cst_3 : f32 to vector<2x16x128xf32>
    %15 = arith.select %13, %10, %14 : vector<2x16x128xi1>, vector<2x16x128xf32>
    %cst_4 = arith.constant dense<0xFF800000> : vector<2x128xf32>
    %16 = vector.multi_reduction <maximumf>, %15, %cst_4 [1] : vector<2x16x128xf32> to vector<2x128xf32>
    %17 = vector.extract_strided_slice %9 {offsets = [0, 0, 128], sizes = [2, 16, 128], strides = [1, 1, 1]} : vector<2x16x2688xf32> to vector<2x16x128xf32>
    %18 = vector.extract_strided_slice %9 {offsets = [0, 0, 256], sizes = [2, 16, 128], strides = [1, 1, 1]} : vector<2x16x2688xf32> to vector<2x16x128xf32>
    %c15_i32 = arith.constant 15 : i32
    %19 = tpu.dynamic_rotate %18 by %c15_i32 dim 1 : vector<2x16x128xf32>, i32 -> vector<2x16x128xf32>
    %20 = arith.addf %17, %19 : vector<2x16x128xf32>
    %21 = tpu.iota {dimensions = array<i32: 1>} : vector<2x16x128xi32>
    %c15_i32_5 = arith.constant 15 : i32
    %22 = vector.broadcast %c15_i32_5 : i32 to vector<2x16x128xi32>
    %23 = arith.cmpi slt, %21, %22 : vector<2x16x128xi32>
    %cst_6 = arith.constant 0xFF800000 : f32
    %24 = vector.broadcast %cst_6 : f32 to vector<2x16x128xf32>
    %25 = arith.select %23, %20, %24 : vector<2x16x128xi1>, vector<2x16x128xf32>
    %cst_7 = arith.constant dense<0xFF800000> : vector<2x128xf32>
    %26 = vector.multi_reduction <maximumf>, %25, %cst_7 [1] : vector<2x16x128xf32> to vector<2x128xf32>
    %27 = vector.extract_strided_slice %9 {offsets = [0, 0, 384], sizes = [2, 16, 128], strides = [1, 1, 1]} : vector<2x16x2688xf32> to vector<2x16x128xf32>
    %28 = vector.extract_strided_slice %9 {offsets = [0, 0, 512], sizes = [2, 16, 128], strides = [1, 1, 1]} : vector<2x16x2688xf32> to vector<2x16x128xf32>
    %c15_i32_8 = arith.constant 15 : i32
    %29 = tpu.dynamic_rotate %28 by %c15_i32_8 dim 1 : vector<2x16x128xf32>, i32 -> vector<2x16x128xf32>
    %30 = arith.addf %27, %29 : vector<2x16x128xf32>
    %31 = vector.extract_strided_slice %9 {offsets = [0, 0, 640], sizes = [2, 16, 128], strides = [1, 1, 1]} : vector<2x16x2688xf32> to vector<2x16x128xf32>
    %c14_i32 = arith.constant 14 : i32
    %32 = tpu.dynamic_rotate %31 by %c14_i32 dim 1 : vector<2x16x128xf32>, i32 -> vector<2x16x128xf32>
    %33 = arith.addf %30, %32 : vector<2x16x128xf32>
    %34 = tpu.iota {dimensions = array<i32: 1>} : vector<2x16x128xi32>
    %c14_i32_9 = arith.constant 14 : i32
    %35 = vector.broadcast %c14_i32_9 : i32 to vector<2x16x128xi32>
    %36 = arith.cmpi slt, %34, %35 : vector<2x16x128xi32>
    %cst_10 = arith.constant 0xFF800000 : f32
    %37 = vector.broadcast %cst_10 : f32 to vector<2x16x128xf32>
    %38 = arith.select %36, %33, %37 : vector<2x16x128xi1>, vector<2x16x128xf32>
    %cst_11 = arith.constant dense<0xFF800000> : vector<2x128xf32>
    %39 = vector.multi_reduction <maximumf>, %38, %cst_11 [1] : vector<2x16x128xf32> to vector<2x128xf32>
    %40 = vector.extract_strided_slice %9 {offsets = [0, 0, 768], sizes = [2, 16, 128], strides = [1, 1, 1]} : vector<2x16x2688xf32> to vector<2x16x128xf32>
    %41 = vector.extract_strided_slice %9 {offsets = [0, 0, 896], sizes = [2, 16, 128], strides = [1, 1, 1]} : vector<2x16x2688xf32> to vector<2x16x128xf32>
    %c15_i32_12 = arith.constant 15 : i32
    %42 = tpu.dynamic_rotate %41 by %c15_i32_12 dim 1 : vector<2x16x128xf32>, i32 -> vector<2x16x128xf32>
    %43 = arith.addf %40, %42 : vector<2x16x128xf32>
    %44 = vector.extract_strided_slice %9 {offsets = [0, 0, 1024], sizes = [2, 16, 128], strides = [1, 1, 1]} : vector<2x16x2688xf32> to vector<2x16x128xf32>
    %c14_i32_13 = arith.constant 14 : i32
    %45 = tpu.dynamic_rotate %44 by %c14_i32_13 dim 1 : vector<2x16x128xf32>, i32 -> vector<2x16x128xf32>
    %46 = arith.addf %43, %45 : vector<2x16x128xf32>
    %47 = vector.extract_strided_slice %9 {offsets = [0, 0, 1152], sizes = [2, 16, 128], strides = [1, 1, 1]} : vector<2x16x2688xf32> to vector<2x16x128xf32>
    %c13_i32 = arith.constant 13 : i32
    %48 = tpu.dynamic_rotate %47 by %c13_i32 dim 1 : vector<2x16x128xf32>, i32 -> vector<2x16x128xf32>
    %49 = arith.addf %46, %48 : vector<2x16x128xf32>
    %50 = vector.extract_strided_slice %9 {offsets = [0, 0, 1280], sizes = [2, 16, 128], strides = [1, 1, 1]} : vector<2x16x2688xf32> to vector<2x16x128xf32>
    %c12_i32 = arith.constant 12 : i32
    %51 = tpu.dynamic_rotate %50 by %c12_i32 dim 1 : vector<2x16x128xf32>, i32 -> vector<2x16x128xf32>
    %52 = arith.addf %49, %51 : vector<2x16x128xf32>
    %53 = tpu.iota {dimensions = array<i32: 1>} : vector<2x16x128xi32>
    %c12_i32_14 = arith.constant 12 : i32
    %54 = vector.broadcast %c12_i32_14 : i32 to vector<2x16x128xi32>
    %55 = arith.cmpi slt, %53, %54 : vector<2x16x128xi32>
    %cst_15 = arith.constant 0xFF800000 : f32
    %56 = vector.broadcast %cst_15 : f32 to vector<2x16x128xf32>
    %57 = arith.select %55, %52, %56 : vector<2x16x128xi1>, vector<2x16x128xf32>
    %cst_16 = arith.constant dense<0xFF800000> : vector<2x128xf32>
    %58 = vector.multi_reduction <maximumf>, %57, %cst_16 [1] : vector<2x16x128xf32> to vector<2x128xf32>
    %59 = vector.extract_strided_slice %9 {offsets = [0, 0, 1408], sizes = [2, 16, 128], strides = [1, 1, 1]} : vector<2x16x2688xf32> to vector<2x16x128xf32>
    %60 = vector.extract_strided_slice %9 {offsets = [0, 0, 1536], sizes = [2, 16, 128], strides = [1, 1, 1]} : vector<2x16x2688xf32> to vector<2x16x128xf32>
    %c15_i32_17 = arith.constant 15 : i32
    %61 = tpu.dynamic_rotate %60 by %c15_i32_17 dim 1 : vector<2x16x128xf32>, i32 -> vector<2x16x128xf32>
    %62 = arith.addf %59, %61 : vector<2x16x128xf32>
    %63 = vector.extract_strided_slice %9 {offsets = [0, 0, 1664], sizes = [2, 16, 128], strides = [1, 1, 1]} : vector<2x16x2688xf32> to vector<2x16x128xf32>
    %c14_i32_18 = arith.constant 14 : i32
    %64 = tpu.dynamic_rotate %63 by %c14_i32_18 dim 1 : vector<2x16x128xf32>, i32 -> vector<2x16x128xf32>
    %65 = arith.addf %62, %64 : vector<2x16x128xf32>
    %66 = vector.extract_strided_slice %9 {offsets = [0, 0, 1792], sizes = [2, 16, 128], strides = [1, 1, 1]} : vector<2x16x2688xf32> to vector<2x16x128xf32>
    %c13_i32_19 = arith.constant 13 : i32
    %67 = tpu.dynamic_rotate %66 by %c13_i32_19 dim 1 : vector<2x16x128xf32>, i32 -> vector<2x16x128xf32>
    %68 = arith.addf %65, %67 : vector<2x16x128xf32>
    %69 = vector.extract_strided_slice %9 {offsets = [0, 0, 1920], sizes = [2, 16, 128], strides = [1, 1, 1]} : vector<2x16x2688xf32> to vector<2x16x128xf32>
    %c12_i32_20 = arith.constant 12 : i32
    %70 = tpu.dynamic_rotate %69 by %c12_i32_20 dim 1 : vector<2x16x128xf32>, i32 -> vector<2x16x128xf32>
    %71 = arith.addf %68, %70 : vector<2x16x128xf32>
    %72 = vector.extract_strided_slice %9 {offsets = [0, 0, 2048], sizes = [2, 16, 128], strides = [1, 1, 1]} : vector<2x16x2688xf32> to vector<2x16x128xf32>
    %c11_i32 = arith.constant 11 : i32
    %73 = tpu.dynamic_rotate %72 by %c11_i32 dim 1 : vector<2x16x128xf32>, i32 -> vector<2x16x128xf32>
    %74 = arith.addf %71, %73 : vector<2x16x128xf32>
    %75 = vector.extract_strided_slice %9 {offsets = [0, 0, 2176], sizes = [2, 16, 128], strides = [1, 1, 1]} : vector<2x16x2688xf32> to vector<2x16x128xf32>
    %c10_i32 = arith.constant 10 : i32
    %76 = tpu.dynamic_rotate %75 by %c10_i32 dim 1 : vector<2x16x128xf32>, i32 -> vector<2x16x128xf32>
    %77 = arith.addf %74, %76 : vector<2x16x128xf32>
    %78 = vector.extract_strided_slice %9 {offsets = [0, 0, 2304], sizes = [2, 16, 128], strides = [1, 1, 1]} : vector<2x16x2688xf32> to vector<2x16x128xf32>
    %c9_i32 = arith.constant 9 : i32
    %79 = tpu.dynamic_rotate %78 by %c9_i32 dim 1 : vector<2x16x128xf32>, i32 -> vector<2x16x128xf32>
    %80 = arith.addf %77, %79 : vector<2x16x128xf32>
    %81 = vector.extract_strided_slice %9 {offsets = [0, 0, 2432], sizes = [2, 16, 128], strides = [1, 1, 1]} : vector<2x16x2688xf32> to vector<2x16x128xf32>
    %c8_i32 = arith.constant 8 : i32
    %82 = tpu.dynamic_rotate %81 by %c8_i32 dim 1 : vector<2x16x128xf32>, i32 -> vector<2x16x128xf32>
    %83 = arith.addf %80, %82 : vector<2x16x128xf32>
    %84 = vector.extract_strided_slice %9 {offsets = [0, 0, 2560], sizes = [2, 16, 128], strides = [1, 1, 1]} : vector<2x16x2688xf32> to vector<2x16x128xf32>
    %c7_i32 = arith.constant 7 : i32
    %85 = tpu.dynamic_rotate %84 by %c7_i32 dim 1 : vector<2x16x128xf32>, i32 -> vector<2x16x128xf32>
    %86 = arith.addf %83, %85 : vector<2x16x128xf32>
    %87 = tpu.iota {dimensions = array<i32: 1>} : vector<2x16x128xi32>
    %c7_i32_21 = arith.constant 7 : i32
    %88 = vector.broadcast %c7_i32_21 : i32 to vector<2x16x128xi32>
    %89 = arith.cmpi slt, %87, %88 : vector<2x16x128xi32>
    %cst_22 = arith.constant 0xFF800000 : f32
    %90 = vector.broadcast %cst_22 : f32 to vector<2x16x128xf32>
    %91 = arith.select %89, %86, %90 : vector<2x16x128xi1>, vector<2x16x128xf32>
    %cst_23 = arith.constant dense<0xFF800000> : vector<2x128xf32>
    %92 = vector.multi_reduction <maximumf>, %91, %cst_23 [1] : vector<2x16x128xf32> to vector<2x128xf32>
    %93 = tpu.concatenate %16, %26, %39, %58, %92 in 1 : vector<2x128xf32>, vector<2x128xf32>, vector<2x128xf32>, vector<2x128xf32>, vector<2x128xf32> -> vector<2x640xf32>
    %c0_24 = arith.constant 0 : index
    %c0_25 = arith.constant 0 : index
    %94 = vector.load %arg4[%c0_24, %c0_25] : memref<2x128xf32, #tpu.memory_space<vmem>>, vector<2x128xf32>
    %95 = arith.truncf %93 : vector<2x640xf32> to vector<2x640xbf16>
    %c0_26 = arith.constant 0 : index
    %c0_27 = arith.constant 0 : index
    %96 = vector.load %arg2[%c0_26, %c0_27] : memref<640x128xbf16, #tpu.memory_space<vmem>>, vector<640x128xbf16>
    %cst_28 = arith.constant dense<0.000000e+00> : vector<2x128xf32>
    %97 = tpu.matmul %95, %96, %cst_28 {dimension_numbers = #tpu.dot_dimension_numbers<[1], [0], [0], [1], [0, 0, 1, 1], [], []>} : vector<2x640xbf16>, vector<640x128xbf16>, vector<2x128xf32> -> vector<2x128xf32>
    %98 = vector.extract_strided_slice %94 {offsets = [0, 0], sizes = [1, 128], strides = [1, 1]} : vector<2x128xf32> to vector<1x128xf32>
    %99 = vector.broadcast %98 : vector<1x128xf32> to vector<2x128xf32>
    %100 = arith.addf %97, %99 : vector<2x128xf32>
    %cst_29 = arith.constant 0.000000e+00 : f32
    %101 = vector.broadcast %cst_29 : f32 to vector<2x128xf32>
    %102 = arith.maximumf %100, %101 : vector<2x128xf32>
    %103 = arith.truncf %102 : vector<2x128xf32> to vector<2x128xbf16>
    %c0_30 = arith.constant 0 : index
    %c0_31 = arith.constant 0 : index
    %104 = vector.load %arg3[%c0_30, %c0_31] : memref<128x128xbf16, #tpu.memory_space<vmem>>, vector<128x128xbf16>
    %cst_32 = arith.constant dense<0.000000e+00> : vector<2x128xf32>
    %105 = tpu.matmul %103, %104, %cst_32 {dimension_numbers = #tpu.dot_dimension_numbers<[1], [0], [0], [1], [0, 0, 1, 1], [], []>} : vector<2x128xbf16>, vector<128x128xbf16>, vector<2x128xf32> -> vector<2x128xf32>
    %106 = vector.extract_strided_slice %94 {offsets = [1, 0], sizes = [1, 128], strides = [1, 1]} : vector<2x128xf32> to vector<1x128xf32>
    %107 = vector.broadcast %106 : vector<1x128xf32> to vector<2x128xf32>
    %108 = arith.addf %105, %107 : vector<2x128xf32>
    %109 = tpu.iota {dimensions = array<i32: 1>} : vector<2x128xi32>
    %c0_i32 = arith.constant 0 : i32
    %110 = vector.broadcast %c0_i32 : i32 to vector<2x128xi32>
    %111 = arith.cmpi eq, %109, %110 : vector<2x128xi32>
    %112 = arith.negf %108 : vector<2x128xf32>
    %113 = math.exp %112 : vector<2x128xf32>
    %cst_33 = arith.constant 1.000000e+00 : f32
    %114 = vector.broadcast %cst_33 : f32 to vector<2x128xf32>
    %115 = arith.addf %114, %113 : vector<2x128xf32>
    %116 = arith.divf %114, %115 : vector<2x128xf32>
    %117 = arith.select %111, %116, %108 : vector<2x128xi1>, vector<2x128xf32>
    %c0_34 = arith.constant 0 : index
    %c0_35 = arith.constant 0 : index
    %118 = vector.load %arg5[%c0_34, %c0_35] : memref<2x128xf32, #tpu.memory_space<vmem>>, vector<2x128xf32>
    tpu.vector_store %arg5[%c0_34, %c0_35], %117 {strides = array<i32>} : memref<2x128xf32, #tpu.memory_space<vmem>>, vector<2x128xf32>,
    return
  }
}

</mosaic_0001>

<llo_original>
// kernel: tpu_custom_call.1
$region0: #{tpu_custom_call.1}
  #allocation0 [shape = 'u32[]', space=smem, size = 0x4, offset = 0x4, fixed_abs, tag = 'smem constant byte address 0x4 - core index']
  #allocation1 [shape = 'u32[144,128]{1,0:T(1,128)}', space=vmem, size = 0x12000, scoped, tag = 'internal scratch']
  %s0 = inlined_call_operand.vmem [shape: s32[32,1], index: 0, kind: input, shape index: {}]
  %s1 = inlined_call_operand.hbm [shape: bf16[128,2688], index: 1, kind: input, shape index: {}]
  %s2 = inlined_call_operand.hbm [shape: bf16[640,128], index: 2, kind: input, shape index: {}]
  %s3 = inlined_call_operand.hbm [shape: bf16[128,128], index: 3, kind: input, shape index: {}]
  %s4 = inlined_call_operand.vmem [shape: f32[2,128], index: 4, kind: input, shape index: {}]
  %s5 = inlined_call_operand.hbm [shape: f32[2,128], index: 5, kind: output, shape index: {}]
  %s6 = sld [smem:[#allocation0]]
  $region42: #{tpu_custom_call.1} parent=0
    _
  %s8 = ssub.s32 1, %s6
  %s9 = scalar_select 0, %s8, %s6
  $region1: #{tpu_custom_call.1} parent=0
    #allocation2 [shape = 'u8[688128]{0}', space=vmem, size = 0xa8000, scoped, tag = 'input window, operand 1, single buffered']
    #allocation3 [shape = 's32[1]{0}', space=sflag, size = 0x4, scoped, tag = 'scoped memory for tpu_custom_call.1']
    #allocation4 [shape = 's32[1]{0}', space=sflag, size = 0x4, scoped, tag = 'scoped memory for tpu_custom_call.1']
    #allocation5 [shape = 'u8[163840]{0}', space=vmem, size = 0x28000, scoped, tag = 'input window, operand 2, single buffered']
    #allocation6 [shape = 's32[1]{0}', space=sflag, size = 0x4, scoped, tag = 'scoped memory for tpu_custom_call.1']
    #allocation7 [shape = 'u8[32768]{0}', space=vmem, size = 0x8000, scoped, tag = 'input window, operand 3, single buffered']
    #allocation8 [shape = 'u8[1024]{0}', space=vmem, size = 0x400, scoped, tag = 'output window, operand 0, single buffered']
    %10 = vsyncpa [#allocation3], 0
    %11 = vsyncpa [#allocation6], 0
    %12 = vsyncpa [#allocation4], 0
    // Predicated region
    $region2: #{tpu_custom_call.1} parent=1 // pred_check
      _
    $region3: #{tpu_custom_call.1} parent=1 // pred_check_branch
      %14 = sbr.rel (0) target = $region5
    $region4: #{tpu_custom_call.1} parent=1 // pred_region
      _
    $region5: #{tpu_custom_call.1} parent=1 // pred_fallthru
      _
    // Predicated region
    $region6: #{tpu_custom_call.1} parent=1 // pred_check
      _
    $region7: #{tpu_custom_call.1} parent=1 // pred_check_branch
      %16 = sbr.rel (0) target = $region9
    $region8: #{tpu_custom_call.1} parent=1 // pred_region
      %s18 = ssub.s32 21504, 21504
      %19 = vsyncadd [#allocation3], %s18
      %s20 = sshll.u32 [#allocation2], 4
      %s21 = int_to_ptr.vmem [resolvable:$true] %s20
      %26 = dma.hbm_to_vmem [thread:$0]  %s1, 21504, %s21, [#allocation3], 1344, 1344, 84
    $region9: #{tpu_custom_call.1} parent=1 // pred_fallthru
      _
    // Predicated region
    $region10: #{tpu_custom_call.1} parent=1 // pred_check
      _
    $region11: #{tpu_custom_call.1} parent=1 // pred_check_branch
      %28 = sbr.rel (0) target = $region13
    $region12: #{tpu_custom_call.1} parent=1 // pred_region
      %s30 = ssub.s32 5120, 5120
      %31 = vsyncadd [#allocation6], %s30
      %s32 = sshll.u32 [#allocation5], 4
      %s33 = int_to_ptr.vmem [resolvable:$true] %s32
      %38 = dma.hbm_to_vmem [thread:$0]  %s2, 5120, %s33, [#allocation6], 64, 64, 4
    $region13: #{tpu_custom_call.1} parent=1 // pred_fallthru
      _
    // Predicated region
    $region14: #{tpu_custom_call.1} parent=1 // pred_check
      _
    $region15: #{tpu_custom_call.1} parent=1 // pred_check_branch
      %40 = sbr.rel (0) target = $region17
    $region16: #{tpu_custom_call.1} parent=1 // pred_region
      %s42 = ssub.s32 1024, 1024
      %43 = vsyncadd [#allocation6], %s42
      %s44 = sshll.u32 [#allocation7], 4
      %s45 = int_to_ptr.vmem [resolvable:$true] %s44
      %50 = dma.hbm_to_vmem [thread:$0]  %s3, 1024, %s45, [#allocation6], 64, 64, 4
    $region17: #{tpu_custom_call.1} parent=1 // pred_fallthru
      _
    // Predicated region
    $region18: #{tpu_custom_call.1} parent=1 // pred_check
      _
    $region19: #{tpu_custom_call.1} parent=1 // pred_check_branch
      %52 = sbr.rel (0) target = $region21
    $region20: #{tpu_custom_call.1} parent=1 // pred_region
      _
    $region21: #{tpu_custom_call.1} parent=1 // pred_fallthru
      _
    // Predicated region
    $region22: #{tpu_custom_call.1} parent=1 // pred_check
      _
    $region23: #{tpu_custom_call.1} parent=1 // pred_check_branch
      %54 = sbr.rel (0) target = $region25
    $region24: #{tpu_custom_call.1} parent=1 // pred_region
      %55 = dma.done [#allocation3], 21504
    $region25: #{tpu_custom_call.1} parent=1 // pred_fallthru
      _
    // Predicated region
    $region26: #{tpu_custom_call.1} parent=1 // pred_check
      _
    $region27: #{tpu_custom_call.1} parent=1 // pred_check_branch
      %57 = sbr.rel (0) target = $region29
    $region28: #{tpu_custom_call.1} parent=1 // pred_region
      %58 = dma.done [#allocation6], 5120
    $region29: #{tpu_custom_call.1} parent=1 // pred_fallthru
      _
    // Predicated region
    $region30: #{tpu_custom_call.1} parent=1 // pred_check
      _
    $region31: #{tpu_custom_call.1} parent=1 // pred_check_branch
      %60 = sbr.rel (0) target = $region33
    $region32: #{tpu_custom_call.1} parent=1 // pred_region
      %61 = dma.done [#allocation6], 1024
    $region33: #{tpu_custom_call.1} parent=1 // pred_fallthru
      _
    %v63 = vlaneseq
    %v64 = vand.u32 %v63, 127
    %v65 = vld [vmem:[%s0] sm:$0xff]
    %v66 = vld [vmem:[%s0 + $0x8] sm:$0xff]
    %v67 = vld [vmem:[%s0 + $0x10] sm:$0xff]
    %v68 = vld [vmem:[%s0 + $0x18] sm:$0xff]
    %69 = vset.pattern.permute.xlu0 0
    %70 = vperm.xlu0 %69, %v65
    %v71 = vpop.permute.xlu0 %70
    %72 = vset.pattern.permute.xlu0 0
    %73 = vperm.xlu0 %72, %v66
    %v74 = vpop.permute.xlu0 %73
    %75 = vset.pattern.permute.xlu0 0
    %76 = vperm.xlu0 %75, %v67
    %v77 = vpop.permute.xlu0 %76
    %78 = vset.pattern.permute.xlu0 0
    %79 = vperm.xlu0 %78, %v68
    %v80 = vpop.permute.xlu0 %79
    %vm81 = vcmp.eq.s32.totalorder %v64, %v71
    %vm82 = vcmp.eq.s32.totalorder %v64, %v74
    %vm83 = vcmp.eq.s32.totalorder %v64, %v77
    %vm84 = vcmp.eq.s32.totalorder %v64, %v80
    %v85 = vsel %vm81, 1, 0
    %v86 = vsel %vm82, 1, 0
    %v87 = vsel %vm83, 1, 0
    %v88 = vsel %vm84, 1, 0
    %v89 = vcvt.s32.f32 %v85
    %v90 = vcvt.s32.f32 %v86
    %v91 = vcvt.s32.f32 %v87
    %v92 = vcvt.s32.f32 %v88
    %v93 = vpack.c.bf16 %v90, %v89
    %v94 = vpack.c.bf16 %v92, %v91
    %v95 = vld [vmem:[#allocation2] sm:$0xff]
    %v96 = vld [vmem:[#allocation2 + $0x8] sm:$0xff]
    %v97 = vld [vmem:[#allocation2 + $0x10] sm:$0xff]
    %v98 = vld [vmem:[#allocation2 + $0x18] sm:$0xff]
    %v99 = vld [vmem:[#allocation2 + $0x20] sm:$0xff]
    %v100 = vld [vmem:[#allocation2 + $0x28] sm:$0xff]
    %v101 = vld [vmem:[#allocation2 + $0x30] sm:$0xff]
    %v102 = vld [vmem:[#allocation2 + $0x38] sm:$0xff]
    %v103 = vld [vmem:[#allocation2 + $0x40] sm:$0xff]
    %v104 = vld [vmem:[#allocation2 + $0x48] sm:$0xff]
    %v105 = vld [vmem:[#allocation2 + $0x50] sm:$0xf]
    %v106 = vld [vmem:[#allocation2 + $0x54] sm:$0xff]
    %v107 = vld [vmem:[#allocation2 + $0x5c] sm:$0xff]
    %v108 = vld [vmem:[#allocation2 + $0x64] sm:$0xff]
    %v109 = vld [vmem:[#allocation2 + $0x6c] sm:$0xff]
    %v110 = vld [vmem:[#allocation2 + $0x74] sm:$0xff]
    %v111 = vld [vmem:[#allocation2 + $0x7c] sm:$0xff]
    %v112 = vld [vmem:[#allocation2 + $0x84] sm:$0xff]
    %v113 = vld [vmem:[#allocation2 + $0x8c] sm:$0xff]
    %v114 = vld [vmem:[#allocation2 + $0x94] sm:$0xff]
    %v115 = vld [vmem:[#allocation2 + $0x9c] sm:$0xff]
    %v116 = vld [vmem:[#allocation2 + $0xa4] sm:$0xf]
    %v117 = vld [vmem:[#allocation2 + $0xa8] sm:$0xff]
    %v118 = vld [vmem:[#allocation2 + $0xb0] sm:$0xff]
    %v119 = vld [vmem:[#allocation2 + $0xb8] sm:$0xff]
    %v120 = vld [vmem:[#allocation2 + $0xc0] sm:$0xff]
    %v121 = vld [vmem:[#allocation2 + $0xc8] sm:$0xff]
    %v122 = vld [vmem:[#allocation2 + $0xd0] sm:$0xff]
    %v123 = vld [vmem:[#allocation2 + $0xd8] sm:$0xff]
    %v124 = vld [vmem:[#allocation2 + $0xe0] sm:$0xff]
    %v125 = vld [vmem:[#allocation2 + $0xe8] sm:$0xff]
    %v126 = vld [vmem:[#allocation2 + $0xf0] sm:$0xff]
    %v127 = vld [vmem:[#allocation2 + $0xf8] sm:$0xf]
    %v128 = vld [vmem:[#allocation2 + $0xfc] sm:$0xff]
    %v129 = vld [vmem:[#allocation2 + $0x104] sm:$0xff]
    %v130 = vld [vmem:[#allocation2 + $0x10c] sm:$0xff]
    %v131 = vld [vmem:[#allocation2 + $0x114] sm:$0xff]
    %v132 = vld [vmem:[#allocation2 + $0x11c] sm:$0xff]
    %v133 = vld [vmem:[#allocation2 + $0x124] sm:$0xff]
    %v134 = vld [vmem:[#allocation2 + $0x12c] sm:$0xff]
    %v135 = vld [vmem:[#allocation2 + $0x134] sm:$0xff]
    %v136 = vld [vmem:[#allocation2 + $0x13c] sm:$0xff]
    %v137 = vld [vmem:[#allocation2 + $0x144] sm:$0xff]
    %v138 = vld [vmem:[#allocation2 + $0x14c] sm:$0xf]
    %v139 = vld [vmem:[#allocation2 + $0x150] sm:$0xff]
    %v140 = vld [vmem:[#allocation2 + $0x158] sm:$0xff]
    %v141 = vld [vmem:[#allocation2 + $0x160] sm:$0xff]
    %v142 = vld [vmem:[#allocation2 + $0x168] sm:$0xff]
    %v143 = vld [vmem:[#allocation2 + $0x170] sm:$0xff]
    %v144 = vld [vmem:[#allocation2 + $0x178] sm:$0xff]
    %v145 = vld [vmem:[#allocation2 + $0x180] sm:$0xff]
    %v146 = vld [vmem:[#allocation2 + $0x188] sm:$0xff]
    %v147 = vld [vmem:[#allocation2 + $0x190] sm:$0xff]
    %v148 = vld [vmem:[#allocation2 + $0x198] sm:$0xff]
    %v149 = vld [vmem:[#allocation2 + $0x1a0] sm:$0xf]
    %v150 = vld [vmem:[#allocation2 + $0x1a4] sm:$0xff]
    %v151 = vld [vmem:[#allocation2 + $0x1ac] sm:$0xff]
    %v152 = vld [vmem:[#allocation2 + $0x1b4] sm:$0xff]
    %v153 = vld [vmem:[#allocation2 + $0x1bc] sm:$0xff]
    %v154 = vld [vmem:[#allocation2 + $0x1c4] sm:$0xff]
    %v155 = vld [vmem:[#allocation2 + $0x1cc] sm:$0xff]
    %v156 = vld [vmem:[#allocation2 + $0x1d4] sm:$0xff]
    %v157 = vld [vmem:[#allocation2 + $0x1dc] sm:$0xff]
    %v158 = vld [vmem:[#allocation2 + $0x1e4] sm:$0xff]
    %v159 = vld [vmem:[#allocation2 + $0x1ec] sm:$0xff]
    %v160 = vld [vmem:[#allocation2 + $0x1f4] sm:$0xf]
    %v161 = vld [vmem:[#allocation2 + $0x1f8] sm:$0xff]
    %v162 = vld [vmem:[#allocation2 + $0x200] sm:$0xff]
    %v163 = vld [vmem:[#allocation2 + $0x208] sm:$0xff]
    %v164 = vld [vmem:[#allocation2 + $0x210] sm:$0xff]
    %v165 = vld [vmem:[#allocation2 + $0x218] sm:$0xff]
    %v166 = vld [vmem:[#allocation2 + $0x220] sm:$0xff]
    %v167 = vld [vmem:[#allocation2 + $0x228] sm:$0xff]
    %v168 = vld [vmem:[#allocation2 + $0x230] sm:$0xff]
    %v169 = vld [vmem:[#allocation2 + $0x238] sm:$0xff]
    %v170 = vld [vmem:[#allocation2 + $0x240] sm:$0xff]
    %v171 = vld [vmem:[#allocation2 + $0x248] sm:$0xf]
    %v172 = vld [vmem:[#allocation2 + $0x24c] sm:$0xff]
    %v173 = vld [vmem:[#allocation2 + $0x254] sm:$0xff]
    %v174 = vld [vmem:[#allocation2 + $0x25c] sm:$0xff]
    %v175 = vld [vmem:[#allocation2 + $0x264] sm:$0xff]
    %v176 = vld [vmem:[#allocation2 + $0x26c] sm:$0xff]
    %v177 = vld [vmem:[#allocation2 + $0x274] sm:$0xff]
    %v178 = vld [vmem:[#allocation2 + $0x27c] sm:$0xff]
    %v179 = vld [vmem:[#allocation2 + $0x284] sm:$0xff]
    %v180 = vld [vmem:[#allocation2 + $0x28c] sm:$0xff]
    %v181 = vld [vmem:[#allocation2 + $0x294] sm:$0xff]
    %v182 = vld [vmem:[#allocation2 + $0x29c] sm:$0xf]
    %v183 = vld [vmem:[#allocation2 + $0x2a0] sm:$0xff]
    %v184 = vld [vmem:[#allocation2 + $0x2a8] sm:$0xff]
    %v185 = vld [vmem:[#allocation2 + $0x2b0] sm:$0xff]
    %v186 = vld [vmem:[#allocation2 + $0x2b8] sm:$0xff]
    %v187 = vld [vmem:[#allocation2 + $0x2c0] sm:$0xff]
    %v188 = vld [vmem:[#allocation2 + $0x2c8] sm:$0xff]
    %v189 = vld [vmem:[#allocation2 + $0x2d0] sm:$0xff]
    %v190 = vld [vmem:[#allocation2 + $0x2d8] sm:$0xff]
    %v191 = vld [vmem:[#allocation2 + $0x2e0] sm:$0xff]
    %v192 = vld [vmem:[#allocation2 + $0x2e8] sm:$0xff]
    %v193 = vld [vmem:[#allocation2 + $0x2f0] sm:$0xf]
    %v194 = vld [vmem:[#allocation2 + $0x2f4] sm:$0xff]
    %v195 = vld [vmem:[#allocation2 + $0x2fc] sm:$0xff]
    %v196 = vld [vmem:[#allocation2 + $0x304] sm:$0xff]
    %v197 = vld [vmem:[#allocation2 + $0x30c] sm:$0xff]
    %v198 = vld [vmem:[#allocation2 + $0x314] sm:$0xff]
    %v199 = vld [vmem:[#allocation2 + $0x31c] sm:$0xff]
    %v200 = vld [vmem:[#allocation2 + $0x324] sm:$0xff]
    %v201 = vld [vmem:[#allocation2 + $0x32c] sm:$0xff]
    %v202 = vld [vmem:[#allocation2 + $0x334] sm:$0xff]
    %v203 = vld [vmem:[#allocation2 + $0x33c] sm:$0xff]
    %v204 = vld [vmem:[#allocation2 + $0x344] sm:$0xf]
    %v205 = vld [vmem:[#allocation2 + $0x348] sm:$0xff]
    %v206 = vld [vmem:[#allocation2 + $0x350] sm:$0xff]
    %v207 = vld [vmem:[#allocation2 + $0x358] sm:$0xff]
    %v208 = vld [vmem:[#allocation2 + $0x360] sm:$0xff]
    %v209 = vld [vmem:[#allocation2 + $0x368] sm:$0xff]
    %v210 = vld [vmem:[#allocation2 + $0x370] sm:$0xff]
    %v211 = vld [vmem:[#allocation2 + $0x378] sm:$0xff]
    %v212 = vld [vmem:[#allocation2 + $0x380] sm:$0xff]
    %v213 = vld [vmem:[#allocation2 + $0x388] sm:$0xff]
    %v214 = vld [vmem:[#allocation2 + $0x390] sm:$0xff]
    %v215 = vld [vmem:[#allocation2 + $0x398] sm:$0xf]
    %v216 = vld [vmem:[#allocation2 + $0x39c] sm:$0xff]
    %v217 = vld [vmem:[#allocation2 + $0x3a4] sm:$0xff]
    %v218 = vld [vmem:[#allocation2 + $0x3ac] sm:$0xff]
    %v219 = vld [vmem:[#allocation2 + $0x3b4] sm:$0xff]
    %v220 = vld [vmem:[#allocation2 + $0x3bc] sm:$0xff]
    %v221 = vld [vmem:[#allocation2 + $0x3c4] sm:$0xff]
    %v222 = vld [vmem:[#allocation2 + $0x3cc] sm:$0xff]
    %v223 = vld [vmem:[#allocation2 + $0x3d4] sm:$0xff]
    %v224 = vld [vmem:[#allocation2 + $0x3dc] sm:$0xff]
    %v225 = vld [vmem:[#allocation2 + $0x3e4] sm:$0xff]
    %v226 = vld [vmem:[#allocation2 + $0x3ec] sm:$0xf]
    %v227 = vld [vmem:[#allocation2 + $0x3f0] sm:$0xff]
    %v228 = vld [vmem:[#allocation2 + $0x3f8] sm:$0xff]
    %v229 = vld [vmem:[#allocation2 + $0x400] sm:$0xff]
    %v230 = vld [vmem:[#allocation2 + $0x408] sm:$0xff]
    %v231 = vld [vmem:[#allocation2 + $0x410] sm:$0xff]
    %v232 = vld [vmem:[#allocation2 + $0x418] sm:$0xff]
    %v233 = vld [vmem:[#allocation2 + $0x420] sm:$0xff]
    %v234 = vld [vmem:[#allocation2 + $0x428] sm:$0xff]
    %v235 = vld [vmem:[#allocation2 + $0x430] sm:$0xff]
    %v236 = vld [vmem:[#allocation2 + $0x438] sm:$0xff]
    %v237 = vld [vmem:[#allocation2 + $0x440] sm:$0xf]
    %v238 = vld [vmem:[#allocation2 + $0x444] sm:$0xff]
    %v239 = vld [vmem:[#allocation2 + $0x44c] sm:$0xff]
    %v240 = vld [vmem:[#allocation2 + $0x454] sm:$0xff]
    %v241 = vld [vmem:[#allocation2 + $0x45c] sm:$0xff]
    %v242 = vld [vmem:[#allocation2 + $0x464] sm:$0xff]
    %v243 = vld [vmem:[#allocation2 + $0x46c] sm:$0xff]
    %v244 = vld [vmem:[#allocation2 + $0x474] sm:$0xff]
    %v245 = vld [vmem:[#allocation2 + $0x47c] sm:$0xff]
    %v246 = vld [vmem:[#allocation2 + $0x484] sm:$0xff]
    %v247 = vld [vmem:[#allocation2 + $0x48c] sm:$0xff]
    %v248 = vld [vmem:[#allocation2 + $0x494] sm:$0xf]
    %v249 = vld [vmem:[#allocation2 + $0x498] sm:$0xff]
    %v250 = vld [vmem:[#allocation2 + $0x4a0] sm:$0xff]
    %v251 = vld [vmem:[#allocation2 + $0x4a8] sm:$0xff]
    %v252 = vld [vmem:[#allocation2 + $0x4b0] sm:$0xff]
    %v253 = vld [vmem:[#allocation2 + $0x4b8] sm:$0xff]
    %v254 = vld [vmem:[#allocation2 + $0x4c0] sm:$0xff]
    %v255 = vld [vmem:[#allocation2 + $0x4c8] sm:$0xff]
    %v256 = vld [vmem:[#allocation2 + $0x4d0] sm:$0xff]
    %v257 = vld [vmem:[#allocation2 + $0x4d8] sm:$0xff]
    %v258 = vld [vmem:[#allocation2 + $0x4e0] sm:$0xff]
    %v259 = vld [vmem:[#allocation2 + $0x4e8] sm:$0xf]
    %v260 = vld [vmem:[#allocation2 + $0x4ec] sm:$0xff]
    %v261 = vld [vmem:[#allocation2 + $0x4f4] sm:$0xff]
    %v262 = vld [vmem:[#allocation2 + $0x4fc] sm:$0xff]
    %v263 = vld [vmem:[#allocation2 + $0x504] sm:$0xff]
    %v264 = vld [vmem:[#allocation2 + $0x50c] sm:$0xff]
    %v265 = vld [vmem:[#allocation2 + $0x514] sm:$0xff]
    %v266 = vld [vmem:[#allocation2 + $0x51c] sm:$0xff]
    %v267 = vld [vmem:[#allocation2 + $0x524] sm:$0xff]
    %v268 = vld [vmem:[#allocation2 + $0x52c] sm:$0xff]
    %v269 = vld [vmem:[#allocation2 + $0x534] sm:$0xff]
    %v270 = vld [vmem:[#allocation2 + $0x53c] sm:$0xf]
    %v447 = vunpack.c.l.b16 %v95
    %v448 = vunpack.c.h.b16 %v95
    %v449 = vunpack.c.l.b16 %v96
    %v450 = vunpack.c.h.b16 %v96
    %v451 = vunpack.c.l.b16 %v97
    %v452 = vunpack.c.h.b16 %v97
    %v453 = vunpack.c.l.b16 %v98
    %v454 = vunpack.c.h.b16 %v98
    %v455 = vunpack.c.l.b16 %v99
    %v456 = vunpack.c.h.b16 %v99
    %v457 = vunpack.c.l.b16 %v100
    %v458 = vunpack.c.h.b16 %v100
    %v459 = vunpack.c.l.b16 %v101
    %v460 = vunpack.c.h.b16 %v101
    %v461 = vunpack.c.l.b16 %v102
    %v462 = vunpack.c.h.b16 %v102
    %v463 = vunpack.c.l.b16 %v103
    %v464 = vunpack.c.h.b16 %v103
    %v465 = vunpack.c.l.b16 %v104
    %v466 = vunpack.c.h.b16 %v104
    %v467 = vunpack.c.l.b16 %v105
    %v468 = vunpack.c.l.b16 %v106
    %v469 = vunpack.c.h.b16 %v106
    %v470 = vunpack.c.l.b16 %v107
    %v471 = vunpack.c.h.b16 %v107
    %v472 = vunpack.c.l.b16 %v108
    %v473 = vunpack.c.h.b16 %v108
    %v474 = vunpack.c.l.b16 %v109
    %v475 = vunpack.c.h.b16 %v109
    %v476 = vunpack.c.l.b16 %v110
    %v477 = vunpack.c.h.b16 %v110
    %v478 = vunpack.c.l.b16 %v111
    %v479 = vunpack.c.h.b16 %v111
    %v480 = vunpack.c.l.b16 %v112
    %v481 = vunpack.c.h.b16 %v112
    %v482 = vunpack.c.l.b16 %v113
    %v483 = vunpack.c.h.b16 %v113
    %v484 = vunpack.c.l.b16 %v114
    %v485 = vunpack.c.h.b16 %v114
    %v486 = vunpack.c.l.b16 %v115
    %v487 = vunpack.c.h.b16 %v115
    %v488 = vunpack.c.l.b16 %v116
    %v489 = vunpack.c.l.b16 %v117
    %v490 = vunpack.c.h.b16 %v117
    %v491 = vunpack.c.l.b16 %v118
    %v492 = vunpack.c.h.b16 %v118
    %v493 = vunpack.c.l.b16 %v119
    %v494 = vunpack.c.h.b16 %v119
    %v495 = vunpack.c.l.b16 %v120
    %v496 = vunpack.c.h.b16 %v120
    %v497 = vunpack.c.l.b16 %v121
    %v498 = vunpack.c.h.b16 %v121
    %v499 = vunpack.c.l.b16 %v122
    %v500 = vunpack.c.h.b16 %v122
    %v501 = vunpack.c.l.b16 %v123
    %v502 = vunpack.c.h.b16 %v123
    %v503 = vunpack.c.l.b16 %v124
    %v504 = vunpack.c.h.b16 %v124
    %v505 = vunpack.c.l.b16 %v125
    %v506 = vunpack.c.h.b16 %v125
    %v507 = vunpack.c.l.b16 %v126
    %v508 = vunpack.c.h.b16 %v126
    %v509 = vunpack.c.l.b16 %v127
    %v510 = vunpack.c.l.b16 %v128
    %v511 = vunpack.c.h.b16 %v128
    %v512 = vunpack.c.l.b16 %v129
    %v513 = vunpack.c.h.b16 %v129
    %v514 = vunpack.c.l.b16 %v130
    %v515 = vunpack.c.h.b16 %v130
    %v516 = vunpack.c.l.b16 %v131
    %v517 = vunpack.c.h.b16 %v131
    %v518 = vunpack.c.l.b16 %v132
    %v519 = vunpack.c.h.b16 %v132
    %v520 = vunpack.c.l.b16 %v133
    %v521 = vunpack.c.h.b16 %v133
    %v522 = vunpack.c.l.b16 %v134
    %v523 = vunpack.c.h.b16 %v134
    %v524 = vunpack.c.l.b16 %v135
    %v525 = vunpack.c.h.b16 %v135
    %v526 = vunpack.c.l.b16 %v136
    %v527 = vunpack.c.h.b16 %v136
    %v528 = vunpack.c.l.b16 %v137
    %v529 = vunpack.c.h.b16 %v137
    %v530 = vunpack.c.l.b16 %v138
    %v531 = vunpack.c.l.b16 %v139
    %v532 = vunpack.c.h.b16 %v139
    %v533 = vunpack.c.l.b16 %v140
    %v534 = vunpack.c.h.b16 %v140
    %v535 = vunpack.c.l.b16 %v141
    %v536 = vunpack.c.h.b16 %v141
    %v537 = vunpack.c.l.b16 %v142
    %v538 = vunpack.c.h.b16 %v142
    %v539 = vunpack.c.l.b16 %v143
    %v540 = vunpack.c.h.b16 %v143
    %v541 = vunpack.c.l.b16 %v144
    %v542 = vunpack.c.h.b16 %v144
    %v543 = vunpack.c.l.b16 %v145
    %v544 = vunpack.c.h.b16 %v145
    %v545 = vunpack.c.l.b16 %v146
    %v546 = vunpack.c.h.b16 %v146
    %v547 = vunpack.c.l.b16 %v147
    %v548 = vunpack.c.h.b16 %v147
    %v549 = vunpack.c.l.b16 %v148
    %v550 = vunpack.c.h.b16 %v148
    %v551 = vunpack.c.l.b16 %v149
    %v552 = vunpack.c.l.b16 %v150
    %v553 = vunpack.c.h.b16 %v150
    %v554 = vunpack.c.l.b16 %v151
    %v555 = vunpack.c.h.b16 %v151
    %v556 = vunpack.c.l.b16 %v152
    %v557 = vunpack.c.h.b16 %v152
    %v558 = vunpack.c.l.b16 %v153
    %v559 = vunpack.c.h.b16 %v153
    %v560 = vunpack.c.l.b16 %v154
    %v561 = vunpack.c.h.b16 %v154
    %v562 = vunpack.c.l.b16 %v155
    %v563 = vunpack.c.h.b16 %v155
    %v564 = vunpack.c.l.b16 %v156
    %v565 = vunpack.c.h.b16 %v156
    %v566 = vunpack.c.l.b16 %v157
    %v567 = vunpack.c.h.b16 %v157
    %v568 = vunpack.c.l.b16 %v158
    %v569 = vunpack.c.h.b16 %v158
    %v570 = vunpack.c.l.b16 %v159
    %v571 = vunpack.c.h.b16 %v159
    %v572 = vunpack.c.l.b16 %v160
    %v573 = vunpack.c.l.b16 %v161
    %v574 = vunpack.c.h.b16 %v161
    %v575 = vunpack.c.l.b16 %v162
    %v576 = vunpack.c.h.b16 %v162
    %v577 = vunpack.c.l.b16 %v163
    %v578 = vunpack.c.h.b16 %v163
    %v579 = vunpack.c.l.b16 %v164
    %v580 = vunpack.c.h.b16 %v164
    %v581 = vunpack.c.l.b16 %v165
    %v582 = vunpack.c.h.b16 %v165
    %v583 = vunpack.c.l.b16 %v166
    %v584 = vunpack.c.h.b16 %v166
    %v585 = vunpack.c.l.b16 %v167
    %v586 = vunpack.c.h.b16 %v167
    %v587 = vunpack.c.l.b16 %v168
    %v588 = vunpack.c.h.b16 %v168
    %v589 = vunpack.c.l.b16 %v169
    %v590 = vunpack.c.h.b16 %v169
    %v591 = vunpack.c.l.b16 %v170
    %v592 = vunpack.c.h.b16 %v170
    %v593 = vunpack.c.l.b16 %v171
    %v594 = vunpack.c.l.b16 %v172
    %v595 = vunpack.c.h.b16 %v172
    %v596 = vunpack.c.l.b16 %v173
    %v597 = vunpack.c.h.b16 %v173
    %v598 = vunpack.c.l.b16 %v174
    %v599 = vunpack.c.h.b16 %v174
    %v600 = vunpack.c.l.b16 %v175
    %v601 = vunpack.c.h.b16 %v175
    %v602 = vunpack.c.l.b16 %v176
    %v603 = vunpack.c.h.b16 %v176
    %v604 = vunpack.c.l.b16 %v177
    %v605 = vunpack.c.h.b16 %v177
    %v606 = vunpack.c.l.b16 %v178
    %v607 = vunpack.c.h.b16 %v178
    %v608 = vunpack.c.l.b16 %v179
    %v609 = vunpack.c.h.b16 %v179
    %v610 = vunpack.c.l.b16 %v180
    %v611 = vunpack.c.h.b16 %v180
    %v612 = vunpack.c.l.b16 %v181
    %v613 = vunpack.c.h.b16 %v181
    %v614 = vunpack.c.l.b16 %v182
    %v615 = vunpack.c.l.b16 %v183
    %v616 = vunpack.c.h.b16 %v183
    %v617 = vunpack.c.l.b16 %v184
    %v618 = vunpack.c.h.b16 %v184
    %v619 = vunpack.c.l.b16 %v185
    %v620 = vunpack.c.h.b16 %v185
    %v621 = vunpack.c.l.b16 %v186
    %v622 = vunpack.c.h.b16 %v186
    %v623 = vunpack.c.l.b16 %v187
    %v624 = vunpack.c.h.b16 %v187
    %v625 = vunpack.c.l.b16 %v188
    %v626 = vunpack.c.h.b16 %v188
    %v627 = vunpack.c.l.b16 %v189
    %v628 = vunpack.c.h.b16 %v189
    %v629 = vunpack.c.l.b16 %v190
    %v630 = vunpack.c.h.b16 %v190
    %v631 = vunpack.c.l.b16 %v191
    %v632 = vunpack.c.h.b16 %v191
    %v633 = vunpack.c.l.b16 %v192
    %v634 = vunpack.c.h.b16 %v192
    %v635 = vunpack.c.l.b16 %v193
    %v636 = vunpack.c.l.b16 %v194
    %v637 = vunpack.c.h.b16 %v194
    %v638 = vunpack.c.l.b16 %v195
    %v639 = vunpack.c.h.b16 %v195
    %v640 = vunpack.c.l.b16 %v196
    %v641 = vunpack.c.h.b16 %v196
    %v642 = vunpack.c.l.b16 %v197
    %v643 = vunpack.c.h.b16 %v197
    %v644 = vunpack.c.l.b16 %v198
    %v645 = vunpack.c.h.b16 %v198
    %v646 = vunpack.c.l.b16 %v199
    %v647 = vunpack.c.h.b16 %v199
    %v648 = vunpack.c.l.b16 %v200
    %v649 = vunpack.c.h.b16 %v200
    %v650 = vunpack.c.l.b16 %v201
    %v651 = vunpack.c.h.b16 %v201
    %v652 = vunpack.c.l.b16 %v202
    %v653 = vunpack.c.h.b16 %v202
    %v654 = vunpack.c.l.b16 %v203
    %v655 = vunpack.c.h.b16 %v203
    %v656 = vunpack.c.l.b16 %v204
    %v657 = vunpack.c.l.b16 %v205
    %v658 = vunpack.c.h.b16 %v205
    %v659 = vunpack.c.l.b16 %v206
    %v660 = vunpack.c.h.b16 %v206
    %v661 = vunpack.c.l.b16 %v207
    %v662 = vunpack.c.h.b16 %v207
    %v663 = vunpack.c.l.b16 %v208
    %v664 = vunpack.c.h.b16 %v208
    %v665 = vunpack.c.l.b16 %v209
    %v666 = vunpack.c.h.b16 %v209
    %v667 = vunpack.c.l.b16 %v210
    %v668 = vunpack.c.h.b16 %v210
    %v669 = vunpack.c.l.b16 %v211
    %v670 = vunpack.c.h.b16 %v211
    %v671 = vunpack.c.l.b16 %v212
    %v672 = vunpack.c.h.b16 %v212
    %v673 = vunpack.c.l.b16 %v213
    %v674 = vunpack.c.h.b16 %v213
    %v675 = vunpack.c.l.b16 %v214
    %v676 = vunpack.c.h.b16 %v214
    %v677 = vunpack.c.l.b16 %v215
    %v678 = vunpack.c.l.b16 %v216
    %v679 = vunpack.c.h.b16 %v216
    %v680 = vunpack.c.l.b16 %v217
    %v681 = vunpack.c.h.b16 %v217
    %v682 = vunpack.c.l.b16 %v218
    %v683 = vunpack.c.h.b16 %v218
    %v684 = vunpack.c.l.b16 %v219
    %v685 = vunpack.c.h.b16 %v219
    %v686 = vunpack.c.l.b16 %v220
    %v687 = vunpack.c.h.b16 %v220
    %v688 = vunpack.c.l.b16 %v221
    %v689 = vunpack.c.h.b16 %v221
    %v690 = vunpack.c.l.b16 %v222
    %v691 = vunpack.c.h.b16 %v222
    %v692 = vunpack.c.l.b16 %v223
    %v693 = vunpack.c.h.b16 %v223
    %v694 = vunpack.c.l.b16 %v224
    %v695 = vunpack.c.h.b16 %v224
    %v696 = vunpack.c.l.b16 %v225
    %v697 = vunpack.c.h.b16 %v225
    %v698 = vunpack.c.l.b16 %v226
    %v699 = vunpack.c.l.b16 %v227
    %v700 = vunpack.c.h.b16 %v227
    %v701 = vunpack.c.l.b16 %v228
    %v702 = vunpack.c.h.b16 %v228
    %v703 = vunpack.c.l.b16 %v229
    %v704 = vunpack.c.h.b16 %v229
    %v705 = vunpack.c.l.b16 %v230
    %v706 = vunpack.c.h.b16 %v230
    %v707 = vunpack.c.l.b16 %v231
    %v708 = vunpack.c.h.b16 %v231
    %v709 = vunpack.c.l.b16 %v232
    %v710 = vunpack.c.h.b16 %v232
    %v711 = vunpack.c.l.b16 %v233
    %v712 = vunpack.c.h.b16 %v233
    %v713 = vunpack.c.l.b16 %v234
    %v714 = vunpack.c.h.b16 %v234
    %v715 = vunpack.c.l.b16 %v235
    %v716 = vunpack.c.h.b16 %v235
    %v717 = vunpack.c.l.b16 %v236
    %v718 = vunpack.c.h.b16 %v236
    %v719 = vunpack.c.l.b16 %v237
    %v720 = vunpack.c.l.b16 %v238
    %v721 = vunpack.c.h.b16 %v238
    %v722 = vunpack.c.l.b16 %v239
    %v723 = vunpack.c.h.b16 %v239
    %v724 = vunpack.c.l.b16 %v240
    %v725 = vunpack.c.h.b16 %v240
    %v726 = vunpack.c.l.b16 %v241
    %v727 = vunpack.c.h.b16 %v241
    %v728 = vunpack.c.l.b16 %v242
    %v729 = vunpack.c.h.b16 %v242
    %v730 = vunpack.c.l.b16 %v243
    %v731 = vunpack.c.h.b16 %v243
    %v732 = vunpack.c.l.b16 %v244
    %v733 = vunpack.c.h.b16 %v244
    %v734 = vunpack.c.l.b16 %v245
    %v735 = vunpack.c.h.b16 %v245
    %v736 = vunpack.c.l.b16 %v246
    %v737 = vunpack.c.h.b16 %v246
    %v738 = vunpack.c.l.b16 %v247
    %v739 = vunpack.c.h.b16 %v247
    %v740 = vunpack.c.l.b16 %v248
    %v741 = vunpack.c.l.b16 %v249
    %v742 = vunpack.c.h.b16 %v249
    %v743 = vunpack.c.l.b16 %v250
    %v744 = vunpack.c.h.b16 %v250
    %v745 = vunpack.c.l.b16 %v251
    %v746 = vunpack.c.h.b16 %v251
    %v747 = vunpack.c.l.b16 %v252
    %v748 = vunpack.c.h.b16 %v252
    %v749 = vunpack.c.l.b16 %v253
    %v750 = vunpack.c.h.b16 %v253
    %v751 = vunpack.c.l.b16 %v254
    %v752 = vunpack.c.h.b16 %v254
    %v753 = vunpack.c.l.b16 %v255
    %v754 = vunpack.c.h.b16 %v255
    %v755 = vunpack.c.l.b16 %v256
    %v756 = vunpack.c.h.b16 %v256
    %v757 = vunpack.c.l.b16 %v257
    %v758 = vunpack.c.h.b16 %v257
    %v759 = vunpack.c.l.b16 %v258
    %v760 = vunpack.c.h.b16 %v258
    %v761 = vunpack.c.l.b16 %v259
    %v762 = vunpack.c.l.b16 %v260
    %v763 = vunpack.c.h.b16 %v260
    %v764 = vunpack.c.l.b16 %v261
    %v765 = vunpack.c.h.b16 %v261
    %v766 = vunpack.c.l.b16 %v262
    %v767 = vunpack.c.h.b16 %v262
    %v768 = vunpack.c.l.b16 %v263
    %v769 = vunpack.c.h.b16 %v263
    %v770 = vunpack.c.l.b16 %v264
    %v771 = vunpack.c.h.b16 %v264
    %v772 = vunpack.c.l.b16 %v265
    %v773 = vunpack.c.h.b16 %v265
    %v774 = vunpack.c.l.b16 %v266
    %v775 = vunpack.c.h.b16 %v266
    %v776 = vunpack.c.l.b16 %v267
    %v777 = vunpack.c.h.b16 %v267
    %v778 = vunpack.c.l.b16 %v268
    %v779 = vunpack.c.h.b16 %v268
    %v780 = vunpack.c.l.b16 %v269
    %v781 = vunpack.c.h.b16 %v269
    %v782 = vunpack.c.l.b16 %v270
    %v783 = vpack.c.b16 %v468, %v447
    %v784 = vpack.c.b16 %v469, %v448
    %v785 = vpack.c.b16 %v470, %v449
    %v786 = vpack.c.b16 %v471, %v450
    %v787 = vpack.c.b16 %v472, %v451
    %v788 = vpack.c.b16 %v473, %v452
    %v789 = vpack.c.b16 %v474, %v453
    %v790 = vpack.c.b16 %v475, %v454
    %v791 = vpack.c.b16 %v476, %v455
    %v792 = vpack.c.b16 %v477, %v456
    %v793 = vpack.c.b16 %v478, %v457
    %v794 = vpack.c.b16 %v479, %v458
    %v795 = vpack.c.b16 %v480, %v459
    %v796 = vpack.c.b16 %v481, %v460
    %v797 = vpack.c.b16 %v482, %v461
    %v798 = vpack.c.b16 %v483, %v462
    %v799 = vpack.c.b16 %v484, %v463
    %v800 = vpack.c.b16 %v485, %v464
    %v801 = vpack.c.b16 %v486, %v465
    %v802 = vpack.c.b16 %v487, %v466
    %v803 = vpack.c.b16 %v488, %v467
    %v804 = vpack.c.b16 %v510, %v489
    %v805 = vpack.c.b16 %v511, %v490
    %v806 = vpack.c.b16 %v512, %v491
    %v807 = vpack.c.b16 %v513, %v492
    %v808 = vpack.c.b16 %v514, %v493
    %v809 = vpack.c.b16 %v515, %v494
    %v810 = vpack.c.b16 %v516, %v495
    %v811 = vpack.c.b16 %v517, %v496
    %v812 = vpack.c.b16 %v518, %v497
    %v813 = vpack.c.b16 %v519, %v498
    %v814 = vpack.c.b16 %v520, %v499
    %v815 = vpack.c.b16 %v521, %v500
    %v816 = vpack.c.b16 %v522, %v501
    %v817 = vpack.c.b16 %v523, %v502
    %v818 = vpack.c.b16 %v524, %v503
    %v819 = vpack.c.b16 %v525, %v504
    %v820 = vpack.c.b16 %v526, %v505
    %v821 = vpack.c.b16 %v527, %v506
    %v822 = vpack.c.b16 %v528, %v507
    %v823 = vpack.c.b16 %v529, %v508
    %v824 = vpack.c.b16 %v530, %v509
    %v825 = vpack.c.b16 %v552, %v531
    %v826 = vpack.c.b16 %v553, %v532
    %v827 = vpack.c.b16 %v554, %v533
    %v828 = vpack.c.b16 %v555, %v534
    %v829 = vpack.c.b16 %v556, %v535
    %v830 = vpack.c.b16 %v557, %v536
    %v831 = vpack.c.b16 %v558, %v537
    %v832 = vpack.c.b16 %v559, %v538
    %v833 = vpack.c.b16 %v560, %v539
    %v834 = vpack.c.b16 %v561, %v540
    %v835 = vpack.c.b16 %v562, %v541
    %v836 = vpack.c.b16 %v563, %v542
    %v837 = vpack.c.b16 %v564, %v543
    %v838 = vpack.c.b16 %v565, %v544
    %v839 = vpack.c.b16 %v566, %v545
    %v840 = vpack.c.b16 %v567, %v546
    %v841 = vpack.c.b16 %v568, %v547
    %v842 = vpack.c.b16 %v569, %v548
    %v843 = vpack.c.b16 %v570, %v549
    %v844 = vpack.c.b16 %v571, %v550
    %v845 = vpack.c.b16 %v572, %v551
    %v846 = vpack.c.b16 %v594, %v573
    %v847 = vpack.c.b16 %v595, %v574
    %v848 = vpack.c.b16 %v596, %v575
    %v849 = vpack.c.b16 %v597, %v576
    %v850 = vpack.c.b16 %v598, %v577
    %v851 = vpack.c.b16 %v599, %v578
    %v852 = vpack.c.b16 %v600, %v579
    %v853 = vpack.c.b16 %v601, %v580
    %v854 = vpack.c.b16 %v602, %v581
    %v855 = vpack.c.b16 %v603, %v582
    %v856 = vpack.c.b16 %v604, %v583
    %v857 = vpack.c.b16 %v605, %v584
    %v858 = vpack.c.b16 %v606, %v585
    %v859 = vpack.c.b16 %v607, %v586
    %v860 = vpack.c.b16 %v608, %v587
    %v861 = vpack.c.b16 %v609, %v588
    %v862 = vpack.c.b16 %v610, %v589
    %v863 = vpack.c.b16 %v611, %v590
    %v864 = vpack.c.b16 %v612, %v591
    %v865 = vpack.c.b16 %v613, %v592
    %v866 = vpack.c.b16 %v614, %v593
    %v867 = vpack.c.b16 %v636, %v615
    %v868 = vpack.c.b16 %v637, %v616
    %v869 = vpack.c.b16 %v638, %v617
    %v870 = vpack.c.b16 %v639, %v618
    %v871 = vpack.c.b16 %v640, %v619
    %v872 = vpack.c.b16 %v641, %v620
    %v873 = vpack.c.b16 %v642, %v621
    %v874 = vpack.c.b16 %v643, %v622
    %v875 = vpack.c.b16 %v644, %v623
    %v876 = vpack.c.b16 %v645, %v624
    %v877 = vpack.c.b16 %v646, %v625
    %v878 = vpack.c.b16 %v647, %v626
    %v879 = vpack.c.b16 %v648, %v627
    %v880 = vpack.c.b16 %v649, %v628
    %v881 = vpack.c.b16 %v650, %v629
    %v882 = vpack.c.b16 %v651, %v630
    %v883 = vpack.c.b16 %v652, %v631
    %v884 = vpack.c.b16 %v653, %v632
    %v885 = vpack.c.b16 %v654, %v633
    %v886 = vpack.c.b16 %v655, %v634
    %v887 = vpack.c.b16 %v656, %v635
    %v888 = vpack.c.b16 %v678, %v657
    %v889 = vpack.c.b16 %v679, %v658
    %v890 = vpack.c.b16 %v680, %v659
    %v891 = vpack.c.b16 %v681, %v660
    %v892 = vpack.c.b16 %v682, %v661
    %v893 = vpack.c.b16 %v683, %v662
    %v894 = vpack.c.b16 %v684, %v663
    %v895 = vpack.c.b16 %v685, %v664
    %v896 = vpack.c.b16 %v686, %v665
    %v897 = vpack.c.b16 %v687, %v666
    %v898 = vpack.c.b16 %v688, %v667
    %v899 = vpack.c.b16 %v689, %v668
    %v900 = vpack.c.b16 %v690, %v669
    %v901 = vpack.c.b16 %v691, %v670
    %v902 = vpack.c.b16 %v692, %v671
    %v903 = vpack.c.b16 %v693, %v672
    %v904 = vpack.c.b16 %v694, %v673
    %v905 = vpack.c.b16 %v695, %v674
    %v906 = vpack.c.b16 %v696, %v675
    %v907 = vpack.c.b16 %v697, %v676
    %v908 = vpack.c.b16 %v698, %v677
    %v909 = vpack.c.b16 %v720, %v699
    %v910 = vpack.c.b16 %v721, %v700
    %v911 = vpack.c.b16 %v722, %v701
    %v912 = vpack.c.b16 %v723, %v702
    %v913 = vpack.c.b16 %v724, %v703
    %v914 = vpack.c.b16 %v725, %v704
    %v915 = vpack.c.b16 %v726, %v705
    %v916 = vpack.c.b16 %v727, %v706
    %v917 = vpack.c.b16 %v728, %v707
    %v918 = vpack.c.b16 %v729, %v708
    %v919 = vpack.c.b16 %v730, %v709
    %v920 = vpack.c.b16 %v731, %v710
    %v921 = vpack.c.b16 %v732, %v711
    %v922 = vpack.c.b16 %v733, %v712
    %v923 = vpack.c.b16 %v734, %v713
    %v924 = vpack.c.b16 %v735, %v714
    %v925 = vpack.c.b16 %v736, %v715
    %v926 = vpack.c.b16 %v737, %v716
    %v927 = vpack.c.b16 %v738, %v717
    %v928 = vpack.c.b16 %v739, %v718
    %v929 = vpack.c.b16 %v740, %v719
    %v930 = vpack.c.b16 %v762, %v741
    %v931 = vpack.c.b16 %v763, %v742
    %v932 = vpack.c.b16 %v764, %v743
    %v933 = vpack.c.b16 %v765, %v744
    %v934 = vpack.c.b16 %v766, %v745
    %v935 = vpack.c.b16 %v767, %v746
    %v936 = vpack.c.b16 %v768, %v747
    %v937 = vpack.c.b16 %v769, %v748
    %v938 = vpack.c.b16 %v770, %v749
    %v939 = vpack.c.b16 %v771, %v750
    %v940 = vpack.c.b16 %v772, %v751
    %v941 = vpack.c.b16 %v773, %v752
    %v942 = vpack.c.b16 %v774, %v753
    %v943 = vpack.c.b16 %v775, %v754
    %v944 = vpack.c.b16 %v776, %v755
    %v945 = vpack.c.b16 %v777, %v756
    %v946 = vpack.c.b16 %v778, %v757
    %v947 = vpack.c.b16 %v779, %v758
    %v948 = vpack.c.b16 %v780, %v759
    %v949 = vpack.c.b16 %v781, %v760
    %v950 = vpack.c.b16 %v782, %v761
    %1119 = vmatprep.subr.bf16.mxu0 %v784
    %1120 = vmatpush1.bf16.msra.mxu0 %v783
    %1121 = vmatprep.subr.bf16.mxu0 %v805
    %1122 = vmatpush1.bf16.msra.mxu0 %v804
    %1123 = vmatprep.subr.bf16.mxu0 %v826
    %1124 = vmatpush1.bf16.msra.mxu0 %v825
    %1125 = vmatprep.subr.bf16.mxu0 %v847
    %1126 = vmatpush1.bf16.msra.mxu0 %v846
    %1127 = vmatprep.subr.bf16.mxu0 %v868
    %1128 = vmatpush1.bf16.msra.mxu0 %v867
    %1129 = vmatprep.subr.bf16.mxu0 %v889
    %1130 = vmatpush1.bf16.msra.mxu0 %v888
    %1131 = vmatprep.subr.bf16.mxu0 %v910
    %1132 = vmatpush1.bf16.msra.mxu0 %v909
    %1133 = vmatprep.subr.bf16.mxu0 %v931
    %1134 = vmatpush1.bf16.msra.mxu0 %v930
    %1135 = vmatprep.subr.bf16.mxu0 0
    %1136 = vmatpush1.bf16.msra.mxu0 0
    %1137 = vmatprep.subr.bf16.mxu0 0
    %1138 = vmatpush1.bf16.msra.mxu0 0
    %1139 = vmatprep.subr.bf16.mxu0 0
    %1140 = vmatpush1.bf16.msra.mxu0 0
    %1141 = vmatprep.subr.bf16.mxu0 0
    %1142 = vmatpush1.bf16.msra.mxu0 0
    %1143 = vmatprep.subr.bf16.mxu0 0
    %1144 = vmatpush1.bf16.msra.mxu0 0
    %1145 = vmatprep.subr.bf16.mxu0 0
    %1146 = vmatpush1.bf16.msra.mxu0 0
    %1147 = vmatprep.subr.bf16.mxu0 0
    %1148 = vmatpush1.bf16.msra.mxu0 0
    %1149 = vmatprep.subr.bf16.mxu0 0
    %1150 = vmatpush1.bf16.msra.mxu0 0
    %1151 = vmatprep.mubr.bf16.mxu0 0
    %1152 = vmatmul.mubr.bf16.gmra.mrb[0].mxu0 %v93
    %v1153 = vpop.f32.mrb[0].mxu0
    %v1154 = vadd.f32 0.0, %v1153
    %v1155 = vpop.f32.mrb[0].mxu0
    %v1156 = vadd.f32 0.0, %v1155
    %v1157 = vpop.f32.mrb[0].mxu0
    %v1158 = vadd.f32 0.0, %v1157
    %v1159 = vpop.f32.mrb[0].mxu0
    %v1160 = vadd.f32 0.0, %v1159
    %1161 = vmatprep.mubr.bf16.mxu0 0
    %1162 = vmatmul.mubr.bf16.gmra.mrb[0].mxu0 %v94
    %v1163 = vpop.f32.mrb[0].mxu0
    %v1164 = vadd.f32 0.0, %v1163
    %v1165 = vpop.f32.mrb[0].mxu0
    %v1166 = vadd.f32 0.0, %v1165
    %v1167 = vpop.f32.mrb[0].mxu0
    %v1168 = vadd.f32 0.0, %v1167
    %v1169 = vpop.f32.mrb[0].mxu0
    %v1170 = vadd.f32 0.0, %v1169
    %1171 = vdwg.mxu0
    %1172 = vmatprep.subr.bf16.mxu0 %v786
    %1173 = vmatpush1.bf16.msra.mxu0 %v785
    %1174 = vmatprep.subr.bf16.mxu0 %v807
    %1175 = vmatpush1.bf16.msra.mxu0 %v806
    %1176 = vmatprep.subr.bf16.mxu0 %v828
    %1177 = vmatpush1.bf16.msra.mxu0 %v827
    %1178 = vmatprep.subr.bf16.mxu0 %v849
    %1179 = vmatpush1.bf16.msra.mxu0 %v848
    %1180 = vmatprep.subr.bf16.mxu0 %v870
    %1181 = vmatpush1.bf16.msra.mxu0 %v869
    %1182 = vmatprep.subr.bf16.mxu0 %v891
    %1183 = vmatpush1.bf16.msra.mxu0 %v890
    %1184 = vmatprep.subr.bf16.mxu0 %v912
    %1185 = vmatpush1.bf16.msra.mxu0 %v911
    %1186 = vmatprep.subr.bf16.mxu0 %v933
    %1187 = vmatpush1.bf16.msra.mxu0 %v932
    %1188 = vmatprep.subr.bf16.mxu0 0
    %1189 = vmatpush1.bf16.msra.mxu0 0
    %1190 = vmatprep.subr.bf16.mxu0 0
    %1191 = vmatpush1.bf16.msra.mxu0 0
    %1192 = vmatprep.subr.bf16.mxu0 0
    %1193 = vmatpush1.bf16.msra.mxu0 0
    %1194 = vmatprep.subr.bf16.mxu0 0
    %1195 = vmatpush1.bf16.msra.mxu0 0
    %1196 = vmatprep.subr.bf16.mxu0 0
    %1197 = vmatpush1.bf16.msra.mxu0 0
    %1198 = vmatprep.subr.bf16.mxu0 0
    %1199 = vmatpush1.bf16.msra.mxu0 0
    %1200 = vmatprep.subr.bf16.mxu0 0
    %1201 = vmatpush1.bf16.msra.mxu0 0
    %1202 = vmatprep.subr.bf16.mxu0 0
    %1203 = vmatpush1.bf16.msra.mxu0 0
    %1204 = vmatprep.mubr.bf16.mxu0 0
    %1205 = vmatmul.mubr.bf16.gmra.mrb[0].mxu0 %v93
    %v1206 = vpop.f32.mrb[0].mxu0
    %v1207 = vadd.f32 0.0, %v1206
    %v1208 = vpop.f32.mrb[0].mxu0
    %v1209 = vadd.f32 0.0, %v1208
    %v1210 = vpop.f32.mrb[0].mxu0
    %v1211 = vadd.f32 0.0, %v1210
    %v1212 = vpop.f32.mrb[0].mxu0
    %v1213 = vadd.f32 0.0, %v1212
    %1214 = vmatprep.mubr.bf16.mxu0 0
    %1215 = vmatmul.mubr.bf16.gmra.mrb[0].mxu0 %v94
    %v1216 = vpop.f32.mrb[0].mxu0
    %v1217 = vadd.f32 0.0, %v1216
    %v1218 = vpop.f32.mrb[0].mxu0
    %v1219 = vadd.f32 0.0, %v1218
    %v1220 = vpop.f32.mrb[0].mxu0
    %v1221 = vadd.f32 0.0, %v1220
    %v1222 = vpop.f32.mrb[0].mxu0
    %v1223 = vadd.f32 0.0, %v1222
    %1224 = vdwg.mxu0
    %1225 = vmatprep.subr.bf16.mxu0 %v788
    %1226 = vmatpush1.bf16.msra.mxu0 %v787
    %1227 = vmatprep.subr.bf16.mxu0 %v809
    %1228 = vmatpush1.bf16.msra.mxu0 %v808
    %1229 = vmatprep.subr.bf16.mxu0 %v830
    %1230 = vmatpush1.bf16.msra.mxu0 %v829
    %1231 = vmatprep.subr.bf16.mxu0 %v851
    %1232 = vmatpush1.bf16.msra.mxu0 %v850
    %1233 = vmatprep.subr.bf16.mxu0 %v872
    %1234 = vmatpush1.bf16.msra.mxu0 %v871
    %1235 = vmatprep.subr.bf16.mxu0 %v893
    %1236 = vmatpush1.bf16.msra.mxu0 %v892
    %1237 = vmatprep.subr.bf16.mxu0 %v914
    %1238 = vmatpush1.bf16.msra.mxu0 %v913
    %1239 = vmatprep.subr.bf16.mxu0 %v935
    %1240 = vmatpush1.bf16.msra.mxu0 %v934
    %1241 = vmatprep.subr.bf16.mxu0 0
    %1242 = vmatpush1.bf16.msra.mxu0 0
    %1243 = vmatprep.subr.bf16.mxu0 0
    %1244 = vmatpush1.bf16.msra.mxu0 0
    %1245 = vmatprep.subr.bf16.mxu0 0
    %1246 = vmatpush1.bf16.msra.mxu0 0
    %1247 = vmatprep.subr.bf16.mxu0 0
    %1248 = vmatpush1.bf16.msra.mxu0 0
    %1249 = vmatprep.subr.bf16.mxu0 0
    %1250 = vmatpush1.bf16.msra.mxu0 0
    %1251 = vmatprep.subr.bf16.mxu0 0
    %1252 = vmatpush1.bf16.msra.mxu0 0
    %1253 = vmatprep.subr.bf16.mxu0 0
    %1254 = vmatpush1.bf16.msra.mxu0 0
    %1255 = vmatprep.subr.bf16.mxu0 0
    %1256 = vmatpush1.bf16.msra.mxu0 0
    %1257 = vmatprep.mubr.bf16.mxu0 0
    %1258 = vmatmul.mubr.bf16.gmra.mrb[0].mxu0 %v93
    %v1259 = vpop.f32.mrb[0].mxu0
    %v1260 = vadd.f32 0.0, %v1259
    %v1261 = vpop.f32.mrb[0].mxu0
    %v1262 = vadd.f32 0.0, %v1261
    %v1263 = vpop.f32.mrb[0].mxu0
    %v1264 = vadd.f32 0.0, %v1263
    %v1265 = vpop.f32.mrb[0].mxu0
    %v1266 = vadd.f32 0.0, %v1265
    %1267 = vmatprep.mubr.bf16.mxu0 0
    %1268 = vmatmul.mubr.bf16.gmra.mrb[0].mxu0 %v94
    %v1269 = vpop.f32.mrb[0].mxu0
    %v1270 = vadd.f32 0.0, %v1269
    %v1271 = vpop.f32.mrb[0].mxu0
    %v1272 = vadd.f32 0.0, %v1271
    %v1273 = vpop.f32.mrb[0].mxu0
    %v1274 = vadd.f32 0.0, %v1273
    %v1275 = vpop.f32.mrb[0].mxu0
    %v1276 = vadd.f32 0.0, %v1275
    %1277 = vdwg.mxu0
    %1278 = vmatprep.subr.bf16.mxu0 %v790
    %1279 = vmatpush1.bf16.msra.mxu0 %v789
    %1280 = vmatprep.subr.bf16.mxu0 %v811
    %1281 = vmatpush1.bf16.msra.mxu0 %v810
    %1282 = vmatprep.subr.bf16.mxu0 %v832
    %1283 = vmatpush1.bf16.msra.mxu0 %v831
    %1284 = vmatprep.subr.bf16.mxu0 %v853
    %1285 = vmatpush1.bf16.msra.mxu0 %v852
    %1286 = vmatprep.subr.bf16.mxu0 %v874
    %1287 = vmatpush1.bf16.msra.mxu0 %v873
    %1288 = vmatprep.subr.bf16.mxu0 %v895
    %1289 = vmatpush1.bf16.msra.mxu0 %v894
    %1290 = vmatprep.subr.bf16.mxu0 %v916
    %1291 = vmatpush1.bf16.msra.mxu0 %v915
    %1292 = vmatprep.subr.bf16.mxu0 %v937
    %1293 = vmatpush1.bf16.msra.mxu0 %v936
    %1294 = vmatprep.subr.bf16.mxu0 0
    %1295 = vmatpush1.bf16.msra.mxu0 0
    %1296 = vmatprep.subr.bf16.mxu0 0
    %1297 = vmatpush1.bf16.msra.mxu0 0
    %1298 = vmatprep.subr.bf16.mxu0 0
    %1299 = vmatpush1.bf16.msra.mxu0 0
    %1300 = vmatprep.subr.bf16.mxu0 0
    %1301 = vmatpush1.bf16.msra.mxu0 0
    %1302 = vmatprep.subr.bf16.mxu0 0
    %1303 = vmatpush1.bf16.msra.mxu0 0
    %1304 = vmatprep.subr.bf16.mxu0 0
    %1305 = vmatpush1.bf16.msra.mxu0 0
    %1306 = vmatprep.subr.bf16.mxu0 0
    %1307 = vmatpush1.bf16.msra.mxu0 0
    %1308 = vmatprep.subr.bf16.mxu0 0
    %1309 = vmatpush1.bf16.msra.mxu0 0
    %1310 = vmatprep.mubr.bf16.mxu0 0
    %1311 = vmatmul.mubr.bf16.gmra.mrb[0].mxu0 %v93
    %v1312 = vpop.f32.mrb[0].mxu0
    %v1313 = vadd.f32 0.0, %v1312
    %v1314 = vpop.f32.mrb[0].mxu0
    %v1315 = vadd.f32 0.0, %v1314
    %v1316 = vpop.f32.mrb[0].mxu0
    %v1317 = vadd.f32 0.0, %v1316
    %v1318 = vpop.f32.mrb[0].mxu0
    %v1319 = vadd.f32 0.0, %v1318
    %1320 = vmatprep.mubr.bf16.mxu0 0
    %1321 = vmatmul.mubr.bf16.gmra.mrb[0].mxu0 %v94
    %v1322 = vpop.f32.mrb[0].mxu0
    %v1323 = vadd.f32 0.0, %v1322
    %v1324 = vpop.f32.mrb[0].mxu0
    %v1325 = vadd.f32 0.0, %v1324
    %v1326 = vpop.f32.mrb[0].mxu0
    %v1327 = vadd.f32 0.0, %v1326
    %v1328 = vpop.f32.mrb[0].mxu0
    %v1329 = vadd.f32 0.0, %v1328
    %1330 = vdwg.mxu0
    %1331 = vmatprep.subr.bf16.mxu0 %v792
    %1332 = vmatpush1.bf16.msra.mxu0 %v791
    %1333 = vmatprep.subr.bf16.mxu0 %v813
    %1334 = vmatpush1.bf16.msra.mxu0 %v812
    %1335 = vmatprep.subr.bf16.mxu0 %v834
    %1336 = vmatpush1.bf16.msra.mxu0 %v833
    %1337 = vmatprep.subr.bf16.mxu0 %v855
    %1338 = vmatpush1.bf16.msra.mxu0 %v854
    %1339 = vmatprep.subr.bf16.mxu0 %v876
    %1340 = vmatpush1.bf16.msra.mxu0 %v875
    %1341 = vmatprep.subr.bf16.mxu0 %v897
    %1342 = vmatpush1.bf16.msra.mxu0 %v896
    %1343 = vmatprep.subr.bf16.mxu0 %v918
    %1344 = vmatpush1.bf16.msra.mxu0 %v917
    %1345 = vmatprep.subr.bf16.mxu0 %v939
    %1346 = vmatpush1.bf16.msra.mxu0 %v938
    %1347 = vmatprep.subr.bf16.mxu0 0
    %1348 = vmatpush1.bf16.msra.mxu0 0
    %1349 = vmatprep.subr.bf16.mxu0 0
    %1350 = vmatpush1.bf16.msra.mxu0 0
    %1351 = vmatprep.subr.bf16.mxu0 0
    %1352 = vmatpush1.bf16.msra.mxu0 0
    %1353 = vmatprep.subr.bf16.mxu0 0
    %1354 = vmatpush1.bf16.msra.mxu0 0
    %1355 = vmatprep.subr.bf16.mxu0 0
    %1356 = vmatpush1.bf16.msra.mxu0 0
    %1357 = vmatprep.subr.bf16.mxu0 0
    %1358 = vmatpush1.bf16.msra.mxu0 0
    %1359 = vmatprep.subr.bf16.mxu0 0
    %1360 = vmatpush1.bf16.msra.mxu0 0
    %1361 = vmatprep.subr.bf16.mxu0 0
    %1362 = vmatpush1.bf16.msra.mxu0 0
    %1363 = vmatprep.mubr.bf16.mxu0 0
    %1364 = vmatmul.mubr.bf16.gmra.mrb[0].mxu0 %v93
    %v1365 = vpop.f32.mrb[0].mxu0
    %v1366 = vadd.f32 0.0, %v1365
    %v1367 = vpop.f32.mrb[0].mxu0
    %v1368 = vadd.f32 0.0, %v1367
    %v1369 = vpop.f32.mrb[0].mxu0
    %v1370 = vadd.f32 0.0, %v1369
    %v1371 = vpop.f32.mrb[0].mxu0
    %v1372 = vadd.f32 0.0, %v1371
    %1373 = vmatprep.mubr.bf16.mxu0 0
    %1374 = vmatmul.mubr.bf16.gmra.mrb[0].mxu0 %v94
    %v1375 = vpop.f32.mrb[0].mxu0
    %v1376 = vadd.f32 0.0, %v1375
    %v1377 = vpop.f32.mrb[0].mxu0
    %v1378 = vadd.f32 0.0, %v1377
    %v1379 = vpop.f32.mrb[0].mxu0
    %v1380 = vadd.f32 0.0, %v1379
    %v1381 = vpop.f32.mrb[0].mxu0
    %v1382 = vadd.f32 0.0, %v1381
    %1383 = vdwg.mxu0
    %1384 = vmatprep.subr.bf16.mxu0 %v794
    %1385 = vmatpush1.bf16.msra.mxu0 %v793
    %1386 = vmatprep.subr.bf16.mxu0 %v815
    %1387 = vmatpush1.bf16.msra.mxu0 %v814
    %1388 = vmatprep.subr.bf16.mxu0 %v836
    %1389 = vmatpush1.bf16.msra.mxu0 %v835
    %1390 = vmatprep.subr.bf16.mxu0 %v857
    %1391 = vmatpush1.bf16.msra.mxu0 %v856
    %1392 = vmatprep.subr.bf16.mxu0 %v878
    %1393 = vmatpush1.bf16.msra.mxu0 %v877
    %1394 = vmatprep.subr.bf16.mxu0 %v899
    %1395 = vmatpush1.bf16.msra.mxu0 %v898
    %1396 = vmatprep.subr.bf16.mxu0 %v920
    %1397 = vmatpush1.bf16.msra.mxu0 %v919
    %1398 = vmatprep.subr.bf16.mxu0 %v941
    %1399 = vmatpush1.bf16.msra.mxu0 %v940
    %1400 = vmatprep.subr.bf16.mxu0 0
    %1401 = vmatpush1.bf16.msra.mxu0 0
    %1402 = vmatprep.subr.bf16.mxu0 0
    %1403 = vmatpush1.bf16.msra.mxu0 0
    %1404 = vmatprep.subr.bf16.mxu0 0
    %1405 = vmatpush1.bf16.msra.mxu0 0
    %1406 = vmatprep.subr.bf16.mxu0 0
    %1407 = vmatpush1.bf16.msra.mxu0 0
    %1408 = vmatprep.subr.bf16.mxu0 0
    %1409 = vmatpush1.bf16.msra.mxu0 0
    %1410 = vmatprep.subr.bf16.mxu0 0
    %1411 = vmatpush1.bf16.msra.mxu0 0
    %1412 = vmatprep.subr.bf16.mxu0 0
    %1413 = vmatpush1.bf16.msra.mxu0 0
    %1414 = vmatprep.subr.bf16.mxu0 0
    %1415 = vmatpush1.bf16.msra.mxu0 0
    %1416 = vmatprep.mubr.bf16.mxu0 0
    %1417 = vmatmul.mubr.bf16.gmra.mrb[0].mxu0 %v93
    %v1418 = vpop.f32.mrb[0].mxu0
    %v1419 = vadd.f32 0.0, %v1418
    %v1420 = vpop.f32.mrb[0].mxu0
    %v1421 = vadd.f32 0.0, %v1420
    %v1422 = vpop.f32.mrb[0].mxu0
    %v1423 = vadd.f32 0.0, %v1422
    %v1424 = vpop.f32.mrb[0].mxu0
    %v1425 = vadd.f32 0.0, %v1424
    %1426 = vmatprep.mubr.bf16.mxu0 0
    %1427 = vmatmul.mubr.bf16.gmra.mrb[0].mxu0 %v94
    %v1428 = vpop.f32.mrb[0].mxu0
    %v1429 = vadd.f32 0.0, %v1428
    %v1430 = vpop.f32.mrb[0].mxu0
    %v1431 = vadd.f32 0.0, %v1430
    %v1432 = vpop.f32.mrb[0].mxu0
    %v1433 = vadd.f32 0.0, %v1432
    %v1434 = vpop.f32.mrb[0].mxu0
    %v1435 = vadd.f32 0.0, %v1434
    %1436 = vdwg.mxu0
    %1437 = vmatprep.subr.bf16.mxu0 %v796
    %1438 = vmatpush1.bf16.msra.mxu0 %v795
    %1439 = vmatprep.subr.bf16.mxu0 %v817
    %1440 = vmatpush1.bf16.msra.mxu0 %v816
    %1441 = vmatprep.subr.bf16.mxu0 %v838
    %1442 = vmatpush1.bf16.msra.mxu0 %v837
    %1443 = vmatprep.subr.bf16.mxu0 %v859
    %1444 = vmatpush1.bf16.msra.mxu0 %v858
    %1445 = vmatprep.subr.bf16.mxu0 %v880
    %1446 = vmatpush1.bf16.msra.mxu0 %v879
    %1447 = vmatprep.subr.bf16.mxu0 %v901
    %1448 = vmatpush1.bf16.msra.mxu0 %v900
    %1449 = vmatprep.subr.bf16.mxu0 %v922
    %1450 = vmatpush1.bf16.msra.mxu0 %v921
    %1451 = vmatprep.subr.bf16.mxu0 %v943
    %1452 = vmatpush1.bf16.msra.mxu0 %v942
    %1453 = vmatprep.subr.bf16.mxu0 0
    %1454 = vmatpush1.bf16.msra.mxu0 0
    %1455 = vmatprep.subr.bf16.mxu0 0
    %1456 = vmatpush1.bf16.msra.mxu0 0
    %1457 = vmatprep.subr.bf16.mxu0 0
    %1458 = vmatpush1.bf16.msra.mxu0 0
    %1459 = vmatprep.subr.bf16.mxu0 0
    %1460 = vmatpush1.bf16.msra.mxu0 0
    %1461 = vmatprep.subr.bf16.mxu0 0
    %1462 = vmatpush1.bf16.msra.mxu0 0
    %1463 = vmatprep.subr.bf16.mxu0 0
    %1464 = vmatpush1.bf16.msra.mxu0 0
    %1465 = vmatprep.subr.bf16.mxu0 0
    %1466 = vmatpush1.bf16.msra.mxu0 0
    %1467 = vmatprep.subr.bf16.mxu0 0
    %1468 = vmatpush1.bf16.msra.mxu0 0
    %1469 = vmatprep.mubr.bf16.mxu0 0
    %1470 = vmatmul.mubr.bf16.gmra.mrb[0].mxu0 %v93
    %v1471 = vpop.f32.mrb[0].mxu0
    %v1472 = vadd.f32 0.0, %v1471
    %v1473 = vpop.f32.mrb[0].mxu0
    %v1474 = vadd.f32 0.0, %v1473
    %v1475 = vpop.f32.mrb[0].mxu0
    %v1476 = vadd.f32 0.0, %v1475
    %v1477 = vpop.f32.mrb[0].mxu0
    %v1478 = vadd.f32 0.0, %v1477
    %1479 = vmatprep.mubr.bf16.mxu0 0
    %1480 = vmatmul.mubr.bf16.gmra.mrb[0].mxu0 %v94
    %v1481 = vpop.f32.mrb[0].mxu0
    %v1482 = vadd.f32 0.0, %v1481
    %v1483 = vpop.f32.mrb[0].mxu0
    %v1484 = vadd.f32 0.0, %v1483
    %v1485 = vpop.f32.mrb[0].mxu0
    %v1486 = vadd.f32 0.0, %v1485
    %v1487 = vpop.f32.mrb[0].mxu0
    %v1488 = vadd.f32 0.0, %v1487
    %1489 = vdwg.mxu0
    %1490 = vmatprep.subr.bf16.mxu0 %v798
    %1491 = vmatpush1.bf16.msra.mxu0 %v797
    %1492 = vmatprep.subr.bf16.mxu0 %v819
    %1493 = vmatpush1.bf16.msra.mxu0 %v818
    %1494 = vmatprep.subr.bf16.mxu0 %v840
    %1495 = vmatpush1.bf16.msra.mxu0 %v839
    %1496 = vmatprep.subr.bf16.mxu0 %v861
    %1497 = vmatpush1.bf16.msra.mxu0 %v860
    %1498 = vmatprep.subr.bf16.mxu0 %v882
    %1499 = vmatpush1.bf16.msra.mxu0 %v881
    %1500 = vmatprep.subr.bf16.mxu0 %v903
    %1501 = vmatpush1.bf16.msra.mxu0 %v902
    %1502 = vmatprep.subr.bf16.mxu0 %v924
    %1503 = vmatpush1.bf16.msra.mxu0 %v923
    %1504 = vmatprep.subr.bf16.mxu0 %v945
    %1505 = vmatpush1.bf16.msra.mxu0 %v944
    %1506 = vmatprep.subr.bf16.mxu0 0
    %1507 = vmatpush1.bf16.msra.mxu0 0
    %1508 = vmatprep.subr.bf16.mxu0 0
    %1509 = vmatpush1.bf16.msra.mxu0 0
    %1510 = vmatprep.subr.bf16.mxu0 0
    %1511 = vmatpush1.bf16.msra.mxu0 0
    %1512 = vmatprep.subr.bf16.mxu0 0
    %1513 = vmatpush1.bf16.msra.mxu0 0
    %1514 = vmatprep.subr.bf16.mxu0 0
    %1515 = vmatpush1.bf16.msra.mxu0 0
    %1516 = vmatprep.subr.bf16.mxu0 0
    %1517 = vmatpush1.bf16.msra.mxu0 0
    %1518 = vmatprep.subr.bf16.mxu0 0
    %1519 = vmatpush1.bf16.msra.mxu0 0
    %1520 = vmatprep.subr.bf16.mxu0 0
    %1521 = vmatpush1.bf16.msra.mxu0 0
    %1522 = vmatprep.mubr.bf16.mxu0 0
    %1523 = vmatmul.mubr.bf16.gmra.mrb[0].mxu0 %v93
    %v1524 = vpop.f32.mrb[0].mxu0
    %v1525 = vadd.f32 0.0, %v1524
    %v1526 = vpop.f32.mrb[0].mxu0
    %v1527 = vadd.f32 0.0, %v1526
    %v1528 = vpop.f32.mrb[0].mxu0
    %v1529 = vadd.f32 0.0, %v1528
    %v1530 = vpop.f32.mrb[0].mxu0
    %v1531 = vadd.f32 0.0, %v1530
    %1532 = vmatprep.mubr.bf16.mxu0 0
    %1533 = vmatmul.mubr.bf16.gmra.mrb[0].mxu0 %v94
    %v1534 = vpop.f32.mrb[0].mxu0
    %v1535 = vadd.f32 0.0, %v1534
    %v1536 = vpop.f32.mrb[0].mxu0
    %v1537 = vadd.f32 0.0, %v1536
    %v1538 = vpop.f32.mrb[0].mxu0
    %v1539 = vadd.f32 0.0, %v1538
    %v1540 = vpop.f32.mrb[0].mxu0
    %v1541 = vadd.f32 0.0, %v1540
    %1542 = vdwg.mxu0
    %1543 = vmatprep.subr.bf16.mxu0 %v800
    %1544 = vmatpush1.bf16.msra.mxu0 %v799
    %1545 = vmatprep.subr.bf16.mxu0 %v821
    %1546 = vmatpush1.bf16.msra.mxu0 %v820
    %1547 = vmatprep.subr.bf16.mxu0 %v842
    %1548 = vmatpush1.bf16.msra.mxu0 %v841
    %1549 = vmatprep.subr.bf16.mxu0 %v863
    %1550 = vmatpush1.bf16.msra.mxu0 %v862
    %1551 = vmatprep.subr.bf16.mxu0 %v884
    %1552 = vmatpush1.bf16.msra.mxu0 %v883
    %1553 = vmatprep.subr.bf16.mxu0 %v905
    %1554 = vmatpush1.bf16.msra.mxu0 %v904
    %1555 = vmatprep.subr.bf16.mxu0 %v926
    %1556 = vmatpush1.bf16.msra.mxu0 %v925
    %1557 = vmatprep.subr.bf16.mxu0 %v947
    %1558 = vmatpush1.bf16.msra.mxu0 %v946
    %1559 = vmatprep.subr.bf16.mxu0 0
    %1560 = vmatpush1.bf16.msra.mxu0 0
    %1561 = vmatprep.subr.bf16.mxu0 0
    %1562 = vmatpush1.bf16.msra.mxu0 0
    %1563 = vmatprep.subr.bf16.mxu0 0
    %1564 = vmatpush1.bf16.msra.mxu0 0
    %1565 = vmatprep.subr.bf16.mxu0 0
    %1566 = vmatpush1.bf16.msra.mxu0 0
    %1567 = vmatprep.subr.bf16.mxu0 0
    %1568 = vmatpush1.bf16.msra.mxu0 0
    %1569 = vmatprep.subr.bf16.mxu0 0
    %1570 = vmatpush1.bf16.msra.mxu0 0
    %1571 = vmatprep.subr.bf16.mxu0 0
    %1572 = vmatpush1.bf16.msra.mxu0 0
    %1573 = vmatprep.subr.bf16.mxu0 0
    %1574 = vmatpush1.bf16.msra.mxu0 0
    %1575 = vmatprep.mubr.bf16.mxu0 0
    %1576 = vmatmul.mubr.bf16.gmra.mrb[0].mxu0 %v93
    %v1577 = vpop.f32.mrb[0].mxu0
    %v1578 = vadd.f32 0.0, %v1577
    %v1579 = vpop.f32.mrb[0].mxu0
    %v1580 = vadd.f32 0.0, %v1579
    %v1581 = vpop.f32.mrb[0].mxu0
    %v1582 = vadd.f32 0.0, %v1581
    %v1583 = vpop.f32.mrb[0].mxu0
    %v1584 = vadd.f32 0.0, %v1583
    %1585 = vmatprep.mubr.bf16.mxu0 0
    %1586 = vmatmul.mubr.bf16.gmra.mrb[0].mxu0 %v94
    %v1587 = vpop.f32.mrb[0].mxu0
    %v1588 = vadd.f32 0.0, %v1587
    %v1589 = vpop.f32.mrb[0].mxu0
    %v1590 = vadd.f32 0.0, %v1589
    %v1591 = vpop.f32.mrb[0].mxu0
    %v1592 = vadd.f32 0.0, %v1591
    %v1593 = vpop.f32.mrb[0].mxu0
    %v1594 = vadd.f32 0.0, %v1593
    %1595 = vdwg.mxu0
    %1596 = vmatprep.subr.bf16.mxu0 %v802
    %1597 = vmatpush1.bf16.msra.mxu0 %v801
    %1598 = vmatprep.subr.bf16.mxu0 %v823
    %1599 = vmatpush1.bf16.msra.mxu0 %v822
    %1600 = vmatprep.subr.bf16.mxu0 %v844
    %1601 = vmatpush1.bf16.msra.mxu0 %v843
    %1602 = vmatprep.subr.bf16.mxu0 %v865
    %1603 = vmatpush1.bf16.msra.mxu0 %v864
    %1604 = vmatprep.subr.bf16.mxu0 %v886
    %1605 = vmatpush1.bf16.msra.mxu0 %v885
    %1606 = vmatprep.subr.bf16.mxu0 %v907
    %1607 = vmatpush1.bf16.msra.mxu0 %v906
    %1608 = vmatprep.subr.bf16.mxu0 %v928
    %1609 = vmatpush1.bf16.msra.mxu0 %v927
    %1610 = vmatprep.subr.bf16.mxu0 %v949
    %1611 = vmatpush1.bf16.msra.mxu0 %v948
    %1612 = vmatprep.subr.bf16.mxu0 0
    %1613 = vmatpush1.bf16.msra.mxu0 0
    %1614 = vmatprep.subr.bf16.mxu0 0
    %1615 = vmatpush1.bf16.msra.mxu0 0
    %1616 = vmatprep.subr.bf16.mxu0 0
    %1617 = vmatpush1.bf16.msra.mxu0 0
    %1618 = vmatprep.subr.bf16.mxu0 0
    %1619 = vmatpush1.bf16.msra.mxu0 0
    %1620 = vmatprep.subr.bf16.mxu0 0
    %1621 = vmatpush1.bf16.msra.mxu0 0
    %1622 = vmatprep.subr.bf16.mxu0 0
    %1623 = vmatpush1.bf16.msra.mxu0 0
    %1624 = vmatprep.subr.bf16.mxu0 0
    %1625 = vmatpush1.bf16.msra.mxu0 0
    %1626 = vmatprep.subr.bf16.mxu0 0
    %1627 = vmatpush1.bf16.msra.mxu0 0
    %1628 = vmatprep.mubr.bf16.mxu0 0
    %1629 = vmatmul.mubr.bf16.gmra.mrb[0].mxu0 %v93
    %v1630 = vpop.f32.mrb[0].mxu0
    %v1631 = vadd.f32 0.0, %v1630
    %v1632 = vpop.f32.mrb[0].mxu0
    %v1633 = vadd.f32 0.0, %v1632
    %v1634 = vpop.f32.mrb[0].mxu0
    %v1635 = vadd.f32 0.0, %v1634
    %v1636 = vpop.f32.mrb[0].mxu0
    %v1637 = vadd.f32 0.0, %v1636
    %1638 = vmatprep.mubr.bf16.mxu0 0
    %1639 = vmatmul.mubr.bf16.gmra.mrb[0].mxu0 %v94
    %v1640 = vpop.f32.mrb[0].mxu0
    %v1641 = vadd.f32 0.0, %v1640
    %v1642 = vpop.f32.mrb[0].mxu0
    %v1643 = vadd.f32 0.0, %v1642
    %v1644 = vpop.f32.mrb[0].mxu0
    %v1645 = vadd.f32 0.0, %v1644
    %v1646 = vpop.f32.mrb[0].mxu0
    %v1647 = vadd.f32 0.0, %v1646
    %1648 = vdwg.mxu0
    %1649 = vmatprep.subr.bf16.mxu0 0
    %1650 = vmatpush1.bf16.msra.mxu0 %v803
    %1651 = vmatprep.subr.bf16.mxu0 0
    %1652 = vmatpush1.bf16.msra.mxu0 %v824
    %1653 = vmatprep.subr.bf16.mxu0 0
    %1654 = vmatpush1.bf16.msra.mxu0 %v845
    %1655 = vmatprep.subr.bf16.mxu0 0
    %1656 = vmatpush1.bf16.msra.mxu0 %v866
    %1657 = vmatprep.subr.bf16.mxu0 0
    %1658 = vmatpush1.bf16.msra.mxu0 %v887
    %1659 = vmatprep.subr.bf16.mxu0 0
    %1660 = vmatpush1.bf16.msra.mxu0 %v908
    %1661 = vmatprep.subr.bf16.mxu0 0
    %1662 = vmatpush1.bf16.msra.mxu0 %v929
    %1663 = vmatprep.subr.bf16.mxu0 0
    %1664 = vmatpush1.bf16.msra.mxu0 %v950
    %1665 = vmatprep.subr.bf16.mxu0 0
    %1666 = vmatpush1.bf16.msra.mxu0 0
    %1667 = vmatprep.subr.bf16.mxu0 0
    %1668 = vmatpush1.bf16.msra.mxu0 0
    %1669 = vmatprep.subr.bf16.mxu0 0
    %1670 = vmatpush1.bf16.msra.mxu0 0
    %1671 = vmatprep.subr.bf16.mxu0 0
    %1672 = vmatpush1.bf16.msra.mxu0 0
    %1673 = vmatprep.subr.bf16.mxu0 0
    %1674 = vmatpush1.bf16.msra.mxu0 0
    %1675 = vmatprep.subr.bf16.mxu0 0
    %1676 = vmatpush1.bf16.msra.mxu0 0
    %1677 = vmatprep.subr.bf16.mxu0 0
    %1678 = vmatpush1.bf16.msra.mxu0 0
    %1679 = vmatprep.subr.bf16.mxu0 0
    %1680 = vmatpush1.bf16.msra.mxu0 0
    %1681 = vmatprep.mubr.bf16.mxu0 0
    %1682 = vmatmul.mubr.bf16.gmra.mrb[0].mxu0 %v93
    %v1683 = vpop.f32.mrb[0].mxu0
    %v1684 = vadd.f32 0.0, %v1683
    %v1685 = vpop.f32.mrb[0].mxu0
    %v1686 = vpop.f32.mrb[0].mxu0
    %v1687 = vadd.f32 0.0, %v1686
    %v1688 = vpop.f32.mrb[0].mxu0
    %1689 = vmatprep.mubr.bf16.mxu0 0
    %1690 = vmatmul.mubr.bf16.gmra.mrb[0].mxu0 %v94
    %v1691 = vpop.f32.mrb[0].mxu0
    %v1692 = vadd.f32 0.0, %v1691
    %v1693 = vpop.f32.mrb[0].mxu0
    %v1694 = vpop.f32.mrb[0].mxu0
    %v1695 = vadd.f32 0.0, %v1694
    %v1696 = vpop.f32.mrb[0].mxu0
    %1697 = vdwg.mxu0
    %v1698 = vlaneseq
    %v1699 = vshrl.u32 %v1698, 7
    %v1700 = vadd.s32 %v1699, 8
    %vm1701 = vcmp.lt.s32.totalorder %v1699, 16
    %vm1702 = vcmp.lt.s32.totalorder %v1700, 16
    %v1703 = vsel %vm1701, %v1154, -inf
    %v1704 = vsel %vm1702, %v1158, -inf
    %v1705 = vsel %vm1701, %v1164, -inf
    %v1706 = vsel %vm1702, %v1168, -inf
    %v1707 = vmax.f32 %v1703, %v1704
    %v1708 = vrot.slane %v1707, 4
    %v1709 = vmax.f32 %v1707, %v1708
    %v1710 = vrot.slane %v1709, 2
    %v1711 = vmax.f32 %v1709, %v1710
    %v1712 = vrot.slane %v1711, 1
    %v1713 = vmax.f32 %v1711, %v1712
    %v1714 = vmax.f32 %v1705, %v1706
    %v1715 = vrot.slane %v1714, 4
    %v1716 = vmax.f32 %v1714, %v1715
    %v1717 = vrot.slane %v1716, 2
    %v1718 = vmax.f32 %v1716, %v1717
    %v1719 = vrot.slane %v1718, 1
    %v1720 = vmax.f32 %v1718, %v1719
    %v1721 = vrot.slane %v1207, 1
    %v1722 = vrot.slane %v1217, 1
    %v1723 = vrot.slane %v1211, 1
    %v1724 = vrot.slane %v1221, 1
    %vm1725 = vcmp.lt.s32.totalorder %v1699, 7
    %v1726 = vsel %vm1725, %v1721, %v1723
    %v1727 = vsel %vm1725, %v1722, %v1724
    %v1728 = vsel %vm1725, %v1723, %v1721
    %v1729 = vsel %vm1725, %v1724, %v1722
    %v1730 = vadd.f32 %v1156, %v1726
    %v1731 = vadd.f32 %v1160, %v1728
    %v1732 = vadd.f32 %v1166, %v1727
    %v1733 = vadd.f32 %v1170, %v1729
    %vm1734 = vcmp.lt.s32.totalorder %v1699, 15
    %vm1735 = vcmp.lt.s32.totalorder %v1700, 15
    %v1736 = vsel %vm1734, %v1730, -inf
    %v1737 = vsel %vm1735, %v1731, -inf
    %v1738 = vsel %vm1734, %v1732, -inf
    %v1739 = vsel %vm1735, %v1733, -inf
    %v1740 = vmax.f32 %v1736, %v1737
    %v1741 = vrot.slane %v1740, 4
    %v1742 = vmax.f32 %v1740, %v1741
    %v1743 = vrot.slane %v1742, 2
    %v1744 = vmax.f32 %v1742, %v1743
    %v1745 = vrot.slane %v1744, 1
    %v1746 = vmax.f32 %v1744, %v1745
    %v1747 = vmax.f32 %v1738, %v1739
    %v1748 = vrot.slane %v1747, 4
    %v1749 = vmax.f32 %v1747, %v1748
    %v1750 = vrot.slane %v1749, 2
    %v1751 = vmax.f32 %v1749, %v1750
    %v1752 = vrot.slane %v1751, 1
    %v1753 = vmax.f32 %v1751, %v1752
    %v1754 = vrot.slane %v1260, 1
    %v1755 = vrot.slane %v1270, 1
    %v1756 = vrot.slane %v1264, 1
    %v1757 = vrot.slane %v1274, 1
    %v1758 = vsel %vm1725, %v1754, %v1756
    %v1759 = vsel %vm1725, %v1755, %v1757
    %v1760 = vsel %vm1725, %v1756, %v1754
    %v1761 = vsel %vm1725, %v1757, %v1755
    %v1762 = vadd.f32 %v1209, %v1758
    %v1763 = vadd.f32 %v1213, %v1760
    %v1764 = vadd.f32 %v1219, %v1759
    %v1765 = vadd.f32 %v1223, %v1761
    %v1766 = vrot.slane %v1262, 2
    %v1767 = vrot.slane %v1272, 2
    %v1768 = vrot.slane %v1266, 2
    %v1769 = vrot.slane %v1276, 2
    %vm1770 = vcmp.lt.s32.totalorder %v1699, 6
    %v1771 = vsel %vm1770, %v1766, %v1768
    %v1772 = vsel %vm1770, %v1767, %v1769
    %v1773 = vsel %vm1770, %v1768, %v1766
    %v1774 = vsel %vm1770, %v1769, %v1767
    %v1775 = vadd.f32 %v1762, %v1771
    %v1776 = vadd.f32 %v1763, %v1773
    %v1777 = vadd.f32 %v1764, %v1772
    %v1778 = vadd.f32 %v1765, %v1774
    %vm1779 = vcmp.lt.s32.totalorder %v1699, 14
    %vm1780 = vcmp.lt.s32.totalorder %v1700, 14
    %v1781 = vsel %vm1779, %v1775, -inf
    %v1782 = vsel %vm1780, %v1776, -inf
    %v1783 = vsel %vm1779, %v1777, -inf
    %v1784 = vsel %vm1780, %v1778, -inf
    %v1785 = vmax.f32 %v1781, %v1782
    %v1786 = vrot.slane %v1785, 4
    %v1787 = vmax.f32 %v1785, %v1786
    %v1788 = vrot.slane %v1787, 2
    %v1789 = vmax.f32 %v1787, %v1788
    %v1790 = vrot.slane %v1789, 1
    %v1791 = vmax.f32 %v1789, %v1790
    %v1792 = vmax.f32 %v1783, %v1784
    %v1793 = vrot.slane %v1792, 4
    %v1794 = vmax.f32 %v1792, %v1793
    %v1795 = vrot.slane %v1794, 2
    %v1796 = vmax.f32 %v1794, %v1795
    %v1797 = vrot.slane %v1796, 1
    %v1798 = vmax.f32 %v1796, %v1797
    %v1799 = vrot.slane %v1315, 1
    %v1800 = vrot.slane %v1325, 1
    %v1801 = vrot.slane %v1319, 1
    %v1802 = vrot.slane %v1329, 1
    %v1803 = vsel %vm1725, %v1799, %v1801
    %v1804 = vsel %vm1725, %v1800, %v1802
    %v1805 = vsel %vm1725, %v1801, %v1799
    %v1806 = vsel %vm1725, %v1802, %v1800
    %v1807 = vadd.f32 %v1313, %v1803
    %v1808 = vadd.f32 %v1317, %v1805
    %v1809 = vadd.f32 %v1323, %v1804
    %v1810 = vadd.f32 %v1327, %v1806
    %v1811 = vrot.slane %v1366, 2
    %v1812 = vrot.slane %v1376, 2
    %v1813 = vrot.slane %v1370, 2
    %v1814 = vrot.slane %v1380, 2
    %v1815 = vsel %vm1770, %v1811, %v1813
    %v1816 = vsel %vm1770, %v1812, %v1814
    %v1817 = vsel %vm1770, %v1813, %v1811
    %v1818 = vsel %vm1770, %v1814, %v1812
    %v1819 = vadd.f32 %v1807, %v1815
    %v1820 = vadd.f32 %v1808, %v1817
    %v1821 = vadd.f32 %v1809, %v1816
    %v1822 = vadd.f32 %v1810, %v1818
    %v1823 = vrot.slane %v1368, 3
    %v1824 = vrot.slane %v1378, 3
    %v1825 = vrot.slane %v1372, 3
    %v1826 = vrot.slane %v1382, 3
    %vm1827 = vcmp.lt.s32.totalorder %v1699, 5
    %v1828 = vsel %vm1827, %v1823, %v1825
    %v1829 = vsel %vm1827, %v1824, %v1826
    %v1830 = vsel %vm1827, %v1825, %v1823
    %v1831 = vsel %vm1827, %v1826, %v1824
    %v1832 = vadd.f32 %v1819, %v1828
    %v1833 = vadd.f32 %v1820, %v1830
    %v1834 = vadd.f32 %v1821, %v1829
    %v1835 = vadd.f32 %v1822, %v1831
    %v1836 = vrot.slane %v1419, 4
    %v1837 = vrot.slane %v1429, 4
    %v1838 = vrot.slane %v1423, 4
    %v1839 = vrot.slane %v1433, 4
    %vm1840 = vcmp.lt.s32.totalorder %v1699, 4
    %v1841 = vsel %vm1840, %v1836, %v1838
    %v1842 = vsel %vm1840, %v1837, %v1839
    %v1843 = vsel %vm1840, %v1838, %v1836
    %v1844 = vsel %vm1840, %v1839, %v1837
    %v1845 = vadd.f32 %v1832, %v1841
    %v1846 = vadd.f32 %v1833, %v1843
    %v1847 = vadd.f32 %v1834, %v1842
    %v1848 = vadd.f32 %v1835, %v1844
    %vm1849 = vcmp.lt.s32.totalorder %v1699, 12
    %vm1850 = vcmp.lt.s32.totalorder %v1700, 12
    %v1851 = vsel %vm1849, %v1845, -inf
    %v1852 = vsel %vm1850, %v1846, -inf
    %v1853 = vsel %vm1849, %v1847, -inf
    %v1854 = vsel %vm1850, %v1848, -inf
    %v1855 = vmax.f32 %v1851, %v1852
    %v1856 = vrot.slane %v1855, 4
    %v1857 = vmax.f32 %v1855, %v1856
    %v1858 = vrot.slane %v1857, 2
    %v1859 = vmax.f32 %v1857, %v1858
    %v1860 = vrot.slane %v1859, 1
    %v1861 = vmax.f32 %v1859, %v1860
    %v1862 = vmax.f32 %v1853, %v1854
    %v1863 = vrot.slane %v1862, 4
    %v1864 = vmax.f32 %v1862, %v1863
    %v1865 = vrot.slane %v1864, 2
    %v1866 = vmax.f32 %v1864, %v1865
    %v1867 = vrot.slane %v1866, 1
    %v1868 = vmax.f32 %v1866, %v1867
    %v1869 = vrot.slane %v1472, 1
    %v1870 = vrot.slane %v1482, 1
    %v1871 = vrot.slane %v1476, 1
    %v1872 = vrot.slane %v1486, 1
    %v1873 = vsel %vm1725, %v1869, %v1871
    %v1874 = vsel %vm1725, %v1870, %v1872
    %v1875 = vsel %vm1725, %v1871, %v1869
    %v1876 = vsel %vm1725, %v1872, %v1870
    %v1877 = vadd.f32 %v1421, %v1873
    %v1878 = vadd.f32 %v1425, %v1875
    %v1879 = vadd.f32 %v1431, %v1874
    %v1880 = vadd.f32 %v1435, %v1876
    %v1881 = vrot.slane %v1474, 2
    %v1882 = vrot.slane %v1484, 2
    %v1883 = vrot.slane %v1478, 2
    %v1884 = vrot.slane %v1488, 2
    %v1885 = vsel %vm1770, %v1881, %v1883
    %v1886 = vsel %vm1770, %v1882, %v1884
    %v1887 = vsel %vm1770, %v1883, %v1881
    %v1888 = vsel %vm1770, %v1884, %v1882
    %v1889 = vadd.f32 %v1877, %v1885
    %v1890 = vadd.f32 %v1878, %v1887
    %v1891 = vadd.f32 %v1879, %v1886
    %v1892 = vadd.f32 %v1880, %v1888
    %v1893 = vrot.slane %v1525, 3
    %v1894 = vrot.slane %v1535, 3
    %v1895 = vrot.slane %v1529, 3
    %v1896 = vrot.slane %v1539, 3
    %v1897 = vsel %vm1827, %v1893, %v1895
    %v1898 = vsel %vm1827, %v1894, %v1896
    %v1899 = vsel %vm1827, %v1895, %v1893
    %v1900 = vsel %vm1827, %v1896, %v1894
    %v1901 = vadd.f32 %v1889, %v1897
    %v1902 = vadd.f32 %v1890, %v1899
    %v1903 = vadd.f32 %v1891, %v1898
    %v1904 = vadd.f32 %v1892, %v1900
    %v1905 = vrot.slane %v1527, 4
    %v1906 = vrot.slane %v1537, 4
    %v1907 = vrot.slane %v1531, 4
    %v1908 = vrot.slane %v1541, 4
    %v1909 = vsel %vm1840, %v1905, %v1907
    %v1910 = vsel %vm1840, %v1906, %v1908
    %v1911 = vsel %vm1840, %v1907, %v1905
    %v1912 = vsel %vm1840, %v1908, %v1906
    %v1913 = vadd.f32 %v1901, %v1909
    %v1914 = vadd.f32 %v1902, %v1911
    %v1915 = vadd.f32 %v1903, %v1910
    %v1916 = vadd.f32 %v1904, %v1912
    %v1917 = vrot.slane %v1578, 5
    %v1918 = vrot.slane %v1588, 5
    %v1919 = vrot.slane %v1582, 5
    %v1920 = vrot.slane %v1592, 5
    %vm1921 = vcmp.lt.s32.totalorder %v1699, 3
    %v1922 = vsel %vm1921, %v1917, %v1919
    %v1923 = vsel %vm1921, %v1918, %v1920
    %v1924 = vsel %vm1921, %v1919, %v1917
    %v1925 = vsel %vm1921, %v1920, %v1918
    %v1926 = vadd.f32 %v1913, %v1922
    %v1927 = vadd.f32 %v1914, %v1924
    %v1928 = vadd.f32 %v1915, %v1923
    %v1929 = vadd.f32 %v1916, %v1925
    %v1930 = vrot.slane %v1580, 6
    %v1931 = vrot.slane %v1590, 6
    %v1932 = vrot.slane %v1584, 6
    %v1933 = vrot.slane %v1594, 6
    %vm1934 = vcmp.lt.s32.totalorder %v1699, 2
    %v1935 = vsel %vm1934, %v1930, %v1932
    %v1936 = vsel %vm1934, %v1931, %v1933
    %v1937 = vsel %vm1934, %v1932, %v1930
    %v1938 = vsel %vm1934, %v1933, %v1931
    %v1939 = vadd.f32 %v1926, %v1935
    %v1940 = vadd.f32 %v1927, %v1937
    %v1941 = vadd.f32 %v1928, %v1936
    %v1942 = vadd.f32 %v1929, %v1938
    %v1943 = vrot.slane %v1631, 7
    %v1944 = vrot.slane %v1641, 7
    %v1945 = vrot.slane %v1635, 7
    %v1946 = vrot.slane %v1645, 7
    %vm1947 = vcmp.lt.s32.totalorder %v1699, 1
    %v1948 = vsel %vm1947, %v1943, %v1945
    %v1949 = vsel %vm1947, %v1944, %v1946
    %v1950 = vsel %vm1947, %v1945, %v1943
    %v1951 = vsel %vm1947, %v1946, %v1944
    %v1952 = vadd.f32 %v1939, %v1948
    %v1953 = vadd.f32 %v1940, %v1950
    %v1954 = vadd.f32 %v1941, %v1949
    %v1955 = vadd.f32 %v1942, %v1951
    %v1956 = vadd.f32 %v1952, %v1637
    %v1957 = vadd.f32 %v1953, %v1633
    %v1958 = vadd.f32 %v1954, %v1647
    %v1959 = vadd.f32 %v1955, %v1643
    %v1960 = vrot.slane %v1684, 1
    %v1961 = vrot.slane %v1692, 1
    %v1962 = vrot.slane %v1687, 1
    %v1963 = vrot.slane %v1695, 1
    %v1964 = vsel %vm1725, %v1960, %v1962
    %v1965 = vsel %vm1725, %v1961, %v1963
    %v1966 = vsel %vm1725, %v1962, %v1960
    %v1967 = vsel %vm1725, %v1963, %v1961
    %v1968 = vadd.f32 %v1956, %v1966
    %v1969 = vadd.f32 %v1957, %v1964
    %v1970 = vadd.f32 %v1958, %v1967
    %v1971 = vadd.f32 %v1959, %v1965
    %vm1972 = vcmp.lt.s32.totalorder %v1700, 7
    %v1973 = vsel %vm1725, %v1968, -inf
    %v1974 = vsel %vm1972, %v1969, -inf
    %v1975 = vsel %vm1725, %v1970, -inf
    %v1976 = vsel %vm1972, %v1971, -inf
    %v1977 = vmax.f32 %v1973, %v1974
    %v1978 = vrot.slane %v1977, 4
    %v1979 = vmax.f32 %v1977, %v1978
    %v1980 = vrot.slane %v1979, 2
    %v1981 = vmax.f32 %v1979, %v1980
    %v1982 = vrot.slane %v1981, 1
    %v1983 = vmax.f32 %v1981, %v1982
    %v1984 = vmax.f32 %v1975, %v1976
    %v1985 = vrot.slane %v1984, 4
    %v1986 = vmax.f32 %v1984, %v1985
    %v1987 = vrot.slane %v1986, 2
    %v1988 = vmax.f32 %v1986, %v1987
    %v1989 = vrot.slane %v1988, 1
    %v1990 = vmax.f32 %v1988, %v1989
    %vm1993 = vcmask 1041409
    %v1994 = vsel %vm1993, %v1720, %v1713
    %v1998 = vsel %vm1993, %v1753, %v1746
    %v2002 = vsel %vm1993, %v1798, %v1791
    %v2006 = vsel %vm1993, %v1868, %v1861
    %v2010 = vsel %vm1993, %v1990, %v1983
    %v2012 = vld [vmem:[%s4] sm:$0x3]
    %v2013 = vpack.c.bf16 %v1994, %v1994
    %v2014 = vpack.c.bf16 %v1998, %v1998
    %v2015 = vpack.c.bf16 %v2002, %v2002
    %v2016 = vpack.c.bf16 %v2006, %v2006
    %v2017 = vpack.c.bf16 %v2010, %v2010
    %v2018 = vld [vmem:[#allocation5] sm:$0xf]
    %v2019 = vld [vmem:[#allocation5 + $0x4] sm:$0xf]
    %v2020 = vld [vmem:[#allocation5 + $0x8] sm:$0xf]
    %v2021 = vld [vmem:[#allocation5 + $0xc] sm:$0xf]
    %v2022 = vld [vmem:[#allocation5 + $0x10] sm:$0xf]
    %v2023 = vld [vmem:[#allocation5 + $0x14] sm:$0xf]
    %v2024 = vld [vmem:[#allocation5 + $0x18] sm:$0xf]
    %v2025 = vld [vmem:[#allocation5 + $0x1c] sm:$0xf]
    %v2026 = vld [vmem:[#allocation5 + $0x20] sm:$0xf]
    %v2027 = vld [vmem:[#allocation5 + $0x24] sm:$0xf]
    %v2028 = vld [vmem:[#allocation5 + $0x28] sm:$0xf]
    %v2029 = vld [vmem:[#allocation5 + $0x2c] sm:$0xf]
    %v2030 = vld [vmem:[#allocation5 + $0x30] sm:$0xf]
    %v2031 = vld [vmem:[#allocation5 + $0x34] sm:$0xf]
    %v2032 = vld [vmem:[#allocation5 + $0x38] sm:$0xf]
    %v2033 = vld [vmem:[#allocation5 + $0x3c] sm:$0xf]
    %v2034 = vld [vmem:[#allocation5 + $0x40] sm:$0xf]
    %v2035 = vld [vmem:[#allocation5 + $0x44] sm:$0xf]
    %v2036 = vld [vmem:[#allocation5 + $0x48] sm:$0xf]
    %v2037 = vld [vmem:[#allocation5 + $0x4c] sm:$0xf]
    %v2038 = vld [vmem:[#allocation5 + $0x50] sm:$0xf]
    %v2039 = vld [vmem:[#allocation5 + $0x54] sm:$0xf]
    %v2040 = vld [vmem:[#allocation5 + $0x58] sm:$0xf]
    %v2041 = vld [vmem:[#allocation5 + $0x5c] sm:$0xf]
    %v2042 = vld [vmem:[#allocation5 + $0x60] sm:$0xf]
    %v2043 = vld [vmem:[#allocation5 + $0x64] sm:$0xf]
    %v2044 = vld [vmem:[#allocation5 + $0x68] sm:$0xf]
    %v2045 = vld [vmem:[#allocation5 + $0x6c] sm:$0xf]
    %v2046 = vld [vmem:[#allocation5 + $0x70] sm:$0xf]
    %v2047 = vld [vmem:[#allocation5 + $0x74] sm:$0xf]
    %v2048 = vld [vmem:[#allocation5 + $0x78] sm:$0xf]
    %v2049 = vld [vmem:[#allocation5 + $0x7c] sm:$0xf]
    %v2050 = vld [vmem:[#allocation5 + $0x80] sm:$0xf]
    %v2051 = vld [vmem:[#allocation5 + $0x84] sm:$0xf]
    %v2052 = vld [vmem:[#allocation5 + $0x88] sm:$0xf]
    %v2053 = vld [vmem:[#allocation5 + $0x8c] sm:$0xf]
    %v2054 = vld [vmem:[#allocation5 + $0x90] sm:$0xf]
    %v2055 = vld [vmem:[#allocation5 + $0x94] sm:$0xf]
    %v2056 = vld [vmem:[#allocation5 + $0x98] sm:$0xf]
    %v2057 = vld [vmem:[#allocation5 + $0x9c] sm:$0xf]
    %v2058 = vld [vmem:[#allocation5 + $0xa0] sm:$0xf]
    %v2059 = vld [vmem:[#allocation5 + $0xa4] sm:$0xf]
    %v2060 = vld [vmem:[#allocation5 + $0xa8] sm:$0xf]
    %v2061 = vld [vmem:[#allocation5 + $0xac] sm:$0xf]
    %v2062 = vld [vmem:[#allocation5 + $0xb0] sm:$0xf]
    %v2063 = vld [vmem:[#allocation5 + $0xb4] sm:$0xf]
    %v2064 = vld [vmem:[#allocation5 + $0xb8] sm:$0xf]
    %v2065 = vld [vmem:[#allocation5 + $0xbc] sm:$0xf]
    %v2066 = vld [vmem:[#allocation5 + $0xc0] sm:$0xf]
    %v2067 = vld [vmem:[#allocation5 + $0xc4] sm:$0xf]
    %v2068 = vld [vmem:[#allocation5 + $0xc8] sm:$0xf]
    %v2069 = vld [vmem:[#allocation5 + $0xcc] sm:$0xf]
    %v2070 = vld [vmem:[#allocation5 + $0xd0] sm:$0xf]
    %v2071 = vld [vmem:[#allocation5 + $0xd4] sm:$0xf]
    %v2072 = vld [vmem:[#allocation5 + $0xd8] sm:$0xf]
    %v2073 = vld [vmem:[#allocation5 + $0xdc] sm:$0xf]
    %v2074 = vld [vmem:[#allocation5 + $0xe0] sm:$0xf]
    %v2075 = vld [vmem:[#allocation5 + $0xe4] sm:$0xf]
    %v2076 = vld [vmem:[#allocation5 + $0xe8] sm:$0xf]
    %v2077 = vld [vmem:[#allocation5 + $0xec] sm:$0xf]
    %v2078 = vld [vmem:[#allocation5 + $0xf0] sm:$0xf]
    %v2079 = vld [vmem:[#allocation5 + $0xf4] sm:$0xf]
    %v2080 = vld [vmem:[#allocation5 + $0xf8] sm:$0xf]
    %v2081 = vld [vmem:[#allocation5 + $0xfc] sm:$0xf]
    %v2082 = vld [vmem:[#allocation5 + $0x100] sm:$0xf]
    %v2083 = vld [vmem:[#allocation5 + $0x104] sm:$0xf]
    %v2084 = vld [vmem:[#allocation5 + $0x108] sm:$0xf]
    %v2085 = vld [vmem:[#allocation5 + $0x10c] sm:$0xf]
    %v2086 = vld [vmem:[#allocation5 + $0x110] sm:$0xf]
    %v2087 = vld [vmem:[#allocation5 + $0x114] sm:$0xf]
    %v2088 = vld [vmem:[#allocation5 + $0x118] sm:$0xf]
    %v2089 = vld [vmem:[#allocation5 + $0x11c] sm:$0xf]
    %v2090 = vld [vmem:[#allocation5 + $0x120] sm:$0xf]
    %v2091 = vld [vmem:[#allocation5 + $0x124] sm:$0xf]
    %v2092 = vld [vmem:[#allocation5 + $0x128] sm:$0xf]
    %v2093 = vld [vmem:[#allocation5 + $0x12c] sm:$0xf]
    %v2094 = vld [vmem:[#allocation5 + $0x130] sm:$0xf]
    %v2095 = vld [vmem:[#allocation5 + $0x134] sm:$0xf]
    %v2096 = vld [vmem:[#allocation5 + $0x138] sm:$0xf]
    %v2097 = vld [vmem:[#allocation5 + $0x13c] sm:$0xf]
    %v2098 = vlaneseq
    %v2099 = vshrl.u32 %v2098, 7
    %v2100 = vsub.s32 0, %v2099
    %v2101 = vrot.slane %v2012, %v2100
    %v2182 = vunpack.c.l.b16 %v2018
    %v2183 = vunpack.c.l.b16 %v2019
    %v2184 = vunpack.c.l.b16 %v2020
    %v2185 = vunpack.c.l.b16 %v2021
    %v2186 = vunpack.c.l.b16 %v2022
    %v2187 = vunpack.c.l.b16 %v2023
    %v2188 = vunpack.c.l.b16 %v2024
    %v2189 = vunpack.c.l.b16 %v2025
    %v2190 = vunpack.c.l.b16 %v2026
    %v2191 = vunpack.c.l.b16 %v2027
    %v2192 = vunpack.c.l.b16 %v2028
    %v2193 = vunpack.c.l.b16 %v2029
    %v2194 = vunpack.c.l.b16 %v2030
    %v2195 = vunpack.c.l.b16 %v2031
    %v2196 = vunpack.c.l.b16 %v2032
    %v2197 = vunpack.c.l.b16 %v2033
    %v2198 = vunpack.c.l.b16 %v2034
    %v2199 = vunpack.c.l.b16 %v2035
    %v2200 = vunpack.c.l.b16 %v2036
    %v2201 = vunpack.c.l.b16 %v2037
    %v2202 = vunpack.c.l.b16 %v2038
    %v2203 = vunpack.c.l.b16 %v2039
    %v2204 = vunpack.c.l.b16 %v2040
    %v2205 = vunpack.c.l.b16 %v2041
    %v2206 = vunpack.c.l.b16 %v2042
    %v2207 = vunpack.c.l.b16 %v2043
    %v2208 = vunpack.c.l.b16 %v2044
    %v2209 = vunpack.c.l.b16 %v2045
    %v2210 = vunpack.c.l.b16 %v2046
    %v2211 = vunpack.c.l.b16 %v2047
    %v2212 = vunpack.c.l.b16 %v2048
    %v2213 = vunpack.c.l.b16 %v2049
    %v2214 = vunpack.c.l.b16 %v2050
    %v2215 = vunpack.c.l.b16 %v2051
    %v2216 = vunpack.c.l.b16 %v2052
    %v2217 = vunpack.c.l.b16 %v2053
    %v2218 = vunpack.c.l.b16 %v2054
    %v2219 = vunpack.c.l.b16 %v2055
    %v2220 = vunpack.c.l.b16 %v2056
    %v2221 = vunpack.c.l.b16 %v2057
    %v2222 = vunpack.c.l.b16 %v2058
    %v2223 = vunpack.c.l.b16 %v2059
    %v2224 = vunpack.c.l.b16 %v2060
    %v2225 = vunpack.c.l.b16 %v2061
    %v2226 = vunpack.c.l.b16 %v2062
    %v2227 = vunpack.c.l.b16 %v2063
    %v2228 = vunpack.c.l.b16 %v2064
    %v2229 = vunpack.c.l.b16 %v2065
    %v2230 = vunpack.c.l.b16 %v2066
    %v2231 = vunpack.c.l.b16 %v2067
    %v2232 = vunpack.c.l.b16 %v2068
    %v2233 = vunpack.c.l.b16 %v2069
    %v2234 = vunpack.c.l.b16 %v2070
    %v2235 = vunpack.c.l.b16 %v2071
    %v2236 = vunpack.c.l.b16 %v2072
    %v2237 = vunpack.c.l.b16 %v2073
    %v2238 = vunpack.c.l.b16 %v2074
    %v2239 = vunpack.c.l.b16 %v2075
    %v2240 = vunpack.c.l.b16 %v2076
    %v2241 = vunpack.c.l.b16 %v2077
    %v2242 = vunpack.c.l.b16 %v2078
    %v2243 = vunpack.c.l.b16 %v2079
    %v2244 = vunpack.c.l.b16 %v2080
    %v2245 = vunpack.c.l.b16 %v2081
    %v2246 = vunpack.c.l.b16 %v2082
    %v2247 = vunpack.c.l.b16 %v2083
    %v2248 = vunpack.c.l.b16 %v2084
    %v2249 = vunpack.c.l.b16 %v2085
    %v2250 = vunpack.c.l.b16 %v2086
    %v2251 = vunpack.c.l.b16 %v2087
    %v2252 = vunpack.c.l.b16 %v2088
    %v2253 = vunpack.c.l.b16 %v2089
    %v2254 = vunpack.c.l.b16 %v2090
    %v2255 = vunpack.c.l.b16 %v2091
    %v2256 = vunpack.c.l.b16 %v2092
    %v2257 = vunpack.c.l.b16 %v2093
    %v2258 = vunpack.c.l.b16 %v2094
    %v2259 = vunpack.c.l.b16 %v2095
    %v2260 = vunpack.c.l.b16 %v2096
    %v2261 = vunpack.c.l.b16 %v2097
    %v2262 = vpack.c.b16 %v2183, %v2182
    %v2263 = vpack.c.b16 %v2185, %v2184
    %v2264 = vpack.c.b16 %v2187, %v2186
    %v2265 = vpack.c.b16 %v2189, %v2188
    %v2266 = vpack.c.b16 %v2191, %v2190
    %v2267 = vpack.c.b16 %v2193, %v2192
    %v2268 = vpack.c.b16 %v2195, %v2194
    %v2269 = vpack.c.b16 %v2197, %v2196
    %v2270 = vpack.c.b16 %v2199, %v2198
    %v2271 = vpack.c.b16 %v2201, %v2200
    %v2272 = vpack.c.b16 %v2203, %v2202
    %v2273 = vpack.c.b16 %v2205, %v2204
    %v2274 = vpack.c.b16 %v2207, %v2206
    %v2275 = vpack.c.b16 %v2209, %v2208
    %v2276 = vpack.c.b16 %v2211, %v2210
    %v2277 = vpack.c.b16 %v2213, %v2212
    %v2278 = vpack.c.b16 %v2215, %v2214
    %v2279 = vpack.c.b16 %v2217, %v2216
    %v2280 = vpack.c.b16 %v2219, %v2218
    %v2281 = vpack.c.b16 %v2221, %v2220
    %v2282 = vpack.c.b16 %v2223, %v2222
    %v2283 = vpack.c.b16 %v2225, %v2224
    %v2284 = vpack.c.b16 %v2227, %v2226
    %v2285 = vpack.c.b16 %v2229, %v2228
    %v2286 = vpack.c.b16 %v2231, %v2230
    %v2287 = vpack.c.b16 %v2233, %v2232
    %v2288 = vpack.c.b16 %v2235, %v2234
    %v2289 = vpack.c.b16 %v2237, %v2236
    %v2290 = vpack.c.b16 %v2239, %v2238
    %v2291 = vpack.c.b16 %v2241, %v2240
    %v2292 = vpack.c.b16 %v2243, %v2242
    %v2293 = vpack.c.b16 %v2245, %v2244
    %v2294 = vpack.c.b16 %v2247, %v2246
    %v2295 = vpack.c.b16 %v2249, %v2248
    %v2296 = vpack.c.b16 %v2251, %v2250
    %v2297 = vpack.c.b16 %v2253, %v2252
    %v2298 = vpack.c.b16 %v2255, %v2254
    %v2299 = vpack.c.b16 %v2257, %v2256
    %v2300 = vpack.c.b16 %v2259, %v2258
    %v2301 = vpack.c.b16 %v2261, %v2260
    %2342 = vmatprep.subr.bf16.mxu0 0
    %2343 = vmatpush1.bf16.msra.mxu0 %v2262
    %2344 = vmatprep.subr.bf16.mxu0 0
    %2345 = vmatpush1.bf16.msra.mxu0 %v2263
    %2346 = vmatprep.subr.bf16.mxu0 0
    %2347 = vmatpush1.bf16.msra.mxu0 %v2264
    %2348 = vmatprep.subr.bf16.mxu0 0
    %2349 = vmatpush1.bf16.msra.mxu0 %v2265
    %2350 = vmatprep.subr.bf16.mxu0 0
    %2351 = vmatpush1.bf16.msra.mxu0 %v2266
    %2352 = vmatprep.subr.bf16.mxu0 0
    %2353 = vmatpush1.bf16.msra.mxu0 %v2267
    %2354 = vmatprep.subr.bf16.mxu0 0
    %2355 = vmatpush1.bf16.msra.mxu0 %v2268
    %2356 = vmatprep.subr.bf16.mxu0 0
    %2357 = vmatpush1.bf16.msra.mxu0 %v2269
    %2358 = vmatprep.subr.bf16.mxu0 0
    %2359 = vmatpush1.bf16.msra.mxu0 %v2270
    %2360 = vmatprep.subr.bf16.mxu0 0
    %2361 = vmatpush1.bf16.msra.mxu0 %v2271
    %2362 = vmatprep.subr.bf16.mxu0 0
    %2363 = vmatpush1.bf16.msra.mxu0 %v2272
    %2364 = vmatprep.subr.bf16.mxu0 0
    %2365 = vmatpush1.bf16.msra.mxu0 %v2273
    %2366 = vmatprep.subr.bf16.mxu0 0
    %2367 = vmatpush1.bf16.msra.mxu0 %v2274
    %2368 = vmatprep.subr.bf16.mxu0 0
    %2369 = vmatpush1.bf16.msra.mxu0 %v2275
    %2370 = vmatprep.subr.bf16.mxu0 0
    %2371 = vmatpush1.bf16.msra.mxu0 %v2276
    %2372 = vmatprep.subr.bf16.mxu0 0
    %2373 = vmatpush1.bf16.msra.mxu0 %v2277
    %2374 = vmatprep.mubr.bf16.mxu0 %v2014
    %2375 = vmatmul.mubr.bf16.gmra.mrb[0].mxu0 %v2013
    %v2376 = vpop.f32.mrb[0].mxu0
    %v2377 = vadd.f32 %v2101, %v2376
    %v2378 = vpop.f32.mrb[0].mxu0
    %v2379 = vpop.f32.mrb[0].mxu0
    %v2380 = vpop.f32.mrb[0].mxu0
    %2381 = vdwg.mxu0
    %2382 = vmatprep.subr.bf16.mxu0 0
    %2383 = vmatpush1.bf16.msra.mxu0 %v2278
    %2384 = vmatprep.subr.bf16.mxu0 0
    %2385 = vmatpush1.bf16.msra.mxu0 %v2279
    %2386 = vmatprep.subr.bf16.mxu0 0
    %2387 = vmatpush1.bf16.msra.mxu0 %v2280
    %2388 = vmatprep.subr.bf16.mxu0 0
    %2389 = vmatpush1.bf16.msra.mxu0 %v2281
    %2390 = vmatprep.subr.bf16.mxu0 0
    %2391 = vmatpush1.bf16.msra.mxu0 %v2282
    %2392 = vmatprep.subr.bf16.mxu0 0
    %2393 = vmatpush1.bf16.msra.mxu0 %v2283
    %2394 = vmatprep.subr.bf16.mxu0 0
    %2395 = vmatpush1.bf16.msra.mxu0 %v2284
    %2396 = vmatprep.subr.bf16.mxu0 0
    %2397 = vmatpush1.bf16.msra.mxu0 %v2285
    %2398 = vmatprep.subr.bf16.mxu0 0
    %2399 = vmatpush1.bf16.msra.mxu0 %v2286
    %2400 = vmatprep.subr.bf16.mxu0 0
    %2401 = vmatpush1.bf16.msra.mxu0 %v2287
    %2402 = vmatprep.subr.bf16.mxu0 0
    %2403 = vmatpush1.bf16.msra.mxu0 %v2288
    %2404 = vmatprep.subr.bf16.mxu0 0
    %2405 = vmatpush1.bf16.msra.mxu0 %v2289
    %2406 = vmatprep.subr.bf16.mxu0 0
    %2407 = vmatpush1.bf16.msra.mxu0 %v2290
    %2408 = vmatprep.subr.bf16.mxu0 0
    %2409 = vmatpush1.bf16.msra.mxu0 %v2291
    %2410 = vmatprep.subr.bf16.mxu0 0
    %2411 = vmatpush1.bf16.msra.mxu0 %v2292
    %2412 = vmatprep.subr.bf16.mxu0 0
    %2413 = vmatpush1.bf16.msra.mxu0 %v2293
    %2414 = vmatprep.mubr.bf16.mxu0 %v2016
    %2415 = vmatmul.mubr.bf16.gmra.mrb[0].mxu0 %v2015
    %v2416 = vpop.f32.mrb[0].mxu0
    %v2417 = vadd.f32 %v2377, %v2416
    %v2418 = vpop.f32.mrb[0].mxu0
    %v2419 = vpop.f32.mrb[0].mxu0
    %v2420 = vpop.f32.mrb[0].mxu0
    %2421 = vdwg.mxu0
    %2422 = vmatprep.subr.bf16.mxu0 0
    %2423 = vmatpush1.bf16.msra.mxu0 %v2294
    %2424 = vmatprep.subr.bf16.mxu0 0
    %2425 = vmatpush1.bf16.msra.mxu0 %v2295
    %2426 = vmatprep.subr.bf16.mxu0 0
    %2427 = vmatpush1.bf16.msra.mxu0 %v2296
    %2428 = vmatprep.subr.bf16.mxu0 0
    %2429 = vmatpush1.bf16.msra.mxu0 %v2297
    %2430 = vmatprep.subr.bf16.mxu0 0
    %2431 = vmatpush1.bf16.msra.mxu0 %v2298
    %2432 = vmatprep.subr.bf16.mxu0 0
    %2433 = vmatpush1.bf16.msra.mxu0 %v2299
    %2434 = vmatprep.subr.bf16.mxu0 0
    %2435 = vmatpush1.bf16.msra.mxu0 %v2300
    %2436 = vmatprep.subr.bf16.mxu0 0
    %2437 = vmatpush1.bf16.msra.mxu0 %v2301
    %2438 = vmatprep.subr.bf16.mxu0 0
    %2439 = vmatpush1.bf16.msra.mxu0 0
    %2440 = vmatprep.subr.bf16.mxu0 0
    %2441 = vmatpush1.bf16.msra.mxu0 0
    %2442 = vmatprep.subr.bf16.mxu0 0
    %2443 = vmatpush1.bf16.msra.mxu0 0
    %2444 = vmatprep.subr.bf16.mxu0 0
    %2445 = vmatpush1.bf16.msra.mxu0 0
    %2446 = vmatprep.subr.bf16.mxu0 0
    %2447 = vmatpush1.bf16.msra.mxu0 0
    %2448 = vmatprep.subr.bf16.mxu0 0
    %2449 = vmatpush1.bf16.msra.mxu0 0
    %2450 = vmatprep.subr.bf16.mxu0 0
    %2451 = vmatpush1.bf16.msra.mxu0 0
    %2452 = vmatprep.subr.bf16.mxu0 0
    %2453 = vmatpush1.bf16.msra.mxu0 0
    %2454 = vmatprep.mubr.bf16.mxu0 0
    %2455 = vmatmul.mubr.bf16.gmra.mrb[0].mxu0 %v2017
    %v2456 = vpop.f32.mrb[0].mxu0
    %v2457 = vadd.f32 %v2417, %v2456
    %v2458 = vpop.f32.mrb[0].mxu0
    %v2459 = vpop.f32.mrb[0].mxu0
    %v2460 = vpop.f32.mrb[0].mxu0
    %2461 = vdwg.mxu0
    %v2462 = vmax.f32 %v2457, 0.0
    %v2463 = vpack.c.bf16 %v2462, %v2462
    %v2464 = vld [vmem:[#allocation7] sm:$0xf]
    %v2465 = vld [vmem:[#allocation7 + $0x4] sm:$0xf]
    %v2466 = vld [vmem:[#allocation7 + $0x8] sm:$0xf]
    %v2467 = vld [vmem:[#allocation7 + $0xc] sm:$0xf]
    %v2468 = vld [vmem:[#allocation7 + $0x10] sm:$0xf]
    %v2469 = vld [vmem:[#allocation7 + $0x14] sm:$0xf]
    %v2470 = vld [vmem:[#allocation7 + $0x18] sm:$0xf]
    %v2471 = vld [vmem:[#allocation7 + $0x1c] sm:$0xf]
    %v2472 = vld [vmem:[#allocation7 + $0x20] sm:$0xf]
    %v2473 = vld [vmem:[#allocation7 + $0x24] sm:$0xf]
    %v2474 = vld [vmem:[#allocation7 + $0x28] sm:$0xf]
    %v2475 = vld [vmem:[#allocation7 + $0x2c] sm:$0xf]
    %v2476 = vld [vmem:[#allocation7 + $0x30] sm:$0xf]
    %v2477 = vld [vmem:[#allocation7 + $0x34] sm:$0xf]
    %v2478 = vld [vmem:[#allocation7 + $0x38] sm:$0xf]
    %v2479 = vld [vmem:[#allocation7 + $0x3c] sm:$0xf]
    %v2480 = vlaneseq
    %v2481 = vshrl.u32 %v2480, 7
    %v2482 = vsub.s32 1, %v2481
    %v2483 = vrot.slane %v2012, %v2482
    %v2500 = vunpack.c.l.b16 %v2464
    %v2501 = vunpack.c.l.b16 %v2465
    %v2502 = vunpack.c.l.b16 %v2466
    %v2503 = vunpack.c.l.b16 %v2467
    %v2504 = vunpack.c.l.b16 %v2468
    %v2505 = vunpack.c.l.b16 %v2469
    %v2506 = vunpack.c.l.b16 %v2470
    %v2507 = vunpack.c.l.b16 %v2471
    %v2508 = vunpack.c.l.b16 %v2472
    %v2509 = vunpack.c.l.b16 %v2473
    %v2510 = vunpack.c.l.b16 %v2474
    %v2511 = vunpack.c.l.b16 %v2475
    %v2512 = vunpack.c.l.b16 %v2476
    %v2513 = vunpack.c.l.b16 %v2477
    %v2514 = vunpack.c.l.b16 %v2478
    %v2515 = vunpack.c.l.b16 %v2479
    %v2516 = vpack.c.b16 %v2501, %v2500
    %v2517 = vpack.c.b16 %v2503, %v2502
    %v2518 = vpack.c.b16 %v2505, %v2504
    %v2519 = vpack.c.b16 %v2507, %v2506
    %v2520 = vpack.c.b16 %v2509, %v2508
    %v2521 = vpack.c.b16 %v2511, %v2510
    %v2522 = vpack.c.b16 %v2513, %v2512
    %v2523 = vpack.c.b16 %v2515, %v2514
    %2532 = vmatprep.subr.bf16.mxu0 0
    %2533 = vmatpush1.bf16.msra.mxu0 %v2516
    %2534 = vmatprep.subr.bf16.mxu0 0
    %2535 = vmatpush1.bf16.msra.mxu0 %v2517
    %2536 = vmatprep.subr.bf16.mxu0 0
    %2537 = vmatpush1.bf16.msra.mxu0 %v2518
    %2538 = vmatprep.subr.bf16.mxu0 0
    %2539 = vmatpush1.bf16.msra.mxu0 %v2519
    %2540 = vmatprep.subr.bf16.mxu0 0
    %2541 = vmatpush1.bf16.msra.mxu0 %v2520
    %2542 = vmatprep.subr.bf16.mxu0 0
    %2543 = vmatpush1.bf16.msra.mxu0 %v2521
    %2544 = vmatprep.subr.bf16.mxu0 0
    %2545 = vmatpush1.bf16.msra.mxu0 %v2522
    %2546 = vmatprep.subr.bf16.mxu0 0
    %2547 = vmatpush1.bf16.msra.mxu0 %v2523
    %2548 = vmatprep.subr.bf16.mxu0 0
    %2549 = vmatpush1.bf16.msra.mxu0 0
    %2550 = vmatprep.subr.bf16.mxu0 0
    %2551 = vmatpush1.bf16.msra.mxu0 0
    %2552 = vmatprep.subr.bf16.mxu0 0
    %2553 = vmatpush1.bf16.msra.mxu0 0
    %2554 = vmatprep.subr.bf16.mxu0 0
    %2555 = vmatpush1.bf16.msra.mxu0 0
    %2556 = vmatprep.subr.bf16.mxu0 0
    %2557 = vmatpush1.bf16.msra.mxu0 0
    %2558 = vmatprep.subr.bf16.mxu0 0
    %2559 = vmatpush1.bf16.msra.mxu0 0
    %2560 = vmatprep.subr.bf16.mxu0 0
    %2561 = vmatpush1.bf16.msra.mxu0 0
    %2562 = vmatprep.subr.bf16.mxu0 0
    %2563 = vmatpush1.bf16.msra.mxu0 0
    %2564 = vmatprep.mubr.bf16.mxu0 0
    %2565 = vmatmul.mubr.bf16.gmra.mrb[0].mxu0 %v2463
    %v2566 = vpop.f32.mrb[0].mxu0
    %v2567 = vadd.f32 %v2483, %v2566
    %v2568 = vpop.f32.mrb[0].mxu0
    %v2569 = vpop.f32.mrb[0].mxu0
    %v2570 = vpop.f32.mrb[0].mxu0
    %2571 = vdwg.mxu0
    %vm2572 = vcmp.eq.s32.totalorder %v64, 0
    %v2573 = vxor.u32 %v2567, 2147483648
    %v2574 = vmul.f32 %v2573, 1.442695
    %v2575 = vpow.pop %v2574
    %v2576 = vadd.f32 %v2575, 1.0
    %v2577 = vrcp.pop %v2576
    %v2578 = vmul.f32 1.0, %v2577
    %v2579 = vsel %vm2572, %v2578, %v2567
    %2580 = vst [vmem:[#allocation8] sm:$0x3] %v2579
    // Predicated region
    $region34: #{tpu_custom_call.1} parent=1 // pred_check
      _
    $region35: #{tpu_custom_call.1} parent=1 // pred_check_branch
      %2582 = sbr.rel (0) target = $region37
    $region36: #{tpu_custom_call.1} parent=1 // pred_region
      %s2584 = ssub.s32 32, 32
      %2585 = vsyncadd [#allocation4], %s2584
      %s2587 = sshll.u32 [#allocation8], 4
      %s2588 = int_to_ptr.vmem [resolvable:$true] %s2587
      %2590 = dma.vmem_to_hbm [thread:$0]  %s2588, 32, %s5, [#allocation4]
    $region37: #{tpu_custom_call.1} parent=1 // pred_fallthru
      _
    // Predicated region
    $region38: #{tpu_custom_call.1} parent=1 // pred_check
      _
    $region39: #{tpu_custom_call.1} parent=1 // pred_check_branch
      %2592 = sbr.rel (0) target = $region41
    $region40: #{tpu_custom_call.1} parent=1 // pred_region
      %2593 = dma.done [#allocation4], 32
    $region41: #{tpu_custom_call.1} parent=1 // pred_fallthru
      _
    %2594 = vsyncpa [#allocation3], 1
    %2595 = vsyncpa [#allocation6], 1
    %2596 = vsyncpa [#allocation4], 1

</llo_original>
